<compile_context>
chip_gen: v7x
topology: tpu7x:2x2x1
jax: 0.10.0
libtpu: 0.0.40
codegen_flags: <defaults>
</compile_context>

<pallas_src>
import functools

import jax
import jax.numpy as jnp
from jax.experimental import pallas as pl
from jax.experimental.pallas import tpu as pltpu


# ----------------------------------------------------------------------------
# Kernel: one grid step processes a block of batch elements (Bblk, S, H).
# ----------------------------------------------------------------------------
def _block_kernel(
    x_ref,                                   # (Bblk, S, H)
    ln1_g_ref, ln1_b_ref,                    # (1, H) each
    wq_t_ref, wk_t_ref, wv_t_ref,            # (H, H) each (pre-transposed; wq pre-scaled)
    bq_ref, bk_ref, bv_ref,                  # (1, H) each (bq pre-scaled)
    wo_t_ref, bo_ref,                        # (H, H), (1, H)
    ln2_g_ref, ln2_b_ref,                    # (1, H) each
    w1_t_ref, b1_ref,                        # (H, M), (1, M)
    w2_t_ref, b2_ref,                        # (M, H), (1, H)
    *out_refs,                               # out_ref[, attn_ref]
    num_heads: int,
    with_weights: bool,
):
    if with_weights:
        out_ref, attn_ref = out_refs
    else:
        (out_ref,) = out_refs
        attn_ref = None

    eps = jnp.float32(1e-6)                   # module uses LayerNorm(eps=1e-06)
    blk_b, S, H = x_ref.shape
    hd = H // num_heads
    cdt = wq_t_ref.dtype                      # matmul operand dtype (bf16)

    x = x_ref[...].astype(jnp.float32)        # (Bblk, S, H)
    rows = x.reshape(blk_b * S, H)            # fold batch*seq rows -> MXU M dim

    def layernorm(v, g_ref, b_ref):
        mu = jnp.mean(v, axis=-1, keepdims=True)
        d = v - mu
        var = jnp.mean(d * d, axis=-1, keepdims=True)   # two-pass (no cancellation)
        return d * jax.lax.rsqrt(var + eps) * g_ref[...] + b_ref[...]

    def erf_poly(v):
        # Abramowitz & Stegun 7.1.26 (|err| <= 1.5e-7): only exp/mul/add/where,
        # all guaranteed to lower on Mosaic; matches nn.GELU()'s exact erf to
        # well below the bf16 matmul noise floor.
        p = jnp.float32(0.3275911)
        a1 = jnp.float32(0.254829592)
        a2 = jnp.float32(-0.284496736)
        a3 = jnp.float32(1.421413741)
        a4 = jnp.float32(-1.453152027)
        a5 = jnp.float32(1.061405429)
        sgn = jnp.where(v < 0, jnp.float32(-1.0), jnp.float32(1.0))
        av = v * sgn
        t = 1.0 / (1.0 + p * av)
        poly = ((((a5 * t + a4) * t + a3) * t + a2) * t + a1) * t
        return sgn * (1.0 - poly * jnp.exp(-av * av))

    def gelu_exact(v):                        # matches torch.nn.GELU() (erf form)
        return 0.5 * v * (1.0 + erf_poly(v * jnp.float32(0.7071067811865476)))

    # ---- attention branch ---------------------------------------------------
    xn = layernorm(rows, ln1_g_ref, ln1_b_ref).astype(cdt)

    # 1/sqrt(hd) already folded into wq_t / bq on the host side.
    q = (jnp.dot(xn, wq_t_ref[...], preferred_element_type=jnp.float32)
         + bq_ref[...]).reshape(blk_b, S, H)
    k = (jnp.dot(xn, wk_t_ref[...], preferred_element_type=jnp.float32)
         + bk_ref[...]).reshape(blk_b, S, H)
    v = (jnp.dot(xn, wv_t_ref[...], preferred_element_type=jnp.float32)
         + bv_ref[...]).reshape(blk_b, S, H)

    wo_t = wo_t_ref[...]                       # (H, H)

    # Per-head static loop.  Each iteration only *accumulates*:
    #   * attn_o (rows, H) f32: per-head out-projection contribution
    #   * p_sum  (Bblk, S, S) f32: averaged-weights numerator
    # so no per-head slab stores, no concatenate, small per-head live set.
    attn_o = jnp.zeros((blk_b * S, H), jnp.float32)
    p_sum = jnp.zeros((blk_b, S, S), jnp.float32) if with_weights else None

    for hh in range(num_heads):
        sl = slice(hh * hd, (hh + 1) * hd)
        qh = q[:, :, sl].astype(cdt)                          # (Bblk, S, hd)
        kh = k[:, :, sl].astype(cdt)
        vh = v[:, :, sl].astype(cdt)

        s = jnp.einsum('bqd,bkd->bqk', qh, kh,
                       preferred_element_type=jnp.float32)    # (Bblk, S, S)
        s = s - jnp.max(s, axis=-1, keepdims=True)
        e = jnp.exp(s)
        p = e / jnp.sum(e, axis=-1, keepdims=True)            # exact softmax

        if with_weights:
            p_sum = p_sum + p

        o_h = jnp.einsum('bqk,bkd->bqd', p.astype(cdt), vh,
                         preferred_element_type=jnp.float32)  # (Bblk, S, hd)
        # Accumulate the out-projection per head: no (Bblk,S,H) slab, no
        # masked lane-sliced stores (review item 1).
        attn_o = attn_o + jnp.dot(o_h.reshape(blk_b * S, hd).astype(cdt),
                                  wo_t[sl, :],
                                  preferred_element_type=jnp.float32)

    x2 = rows + attn_o + bo_ref[...]                          # residual 1

    # ---- MLP branch ----------------------------------------------------------
    xn2 = layernorm(x2, ln2_g_ref, ln2_b_ref).astype(cdt)
    h1 = jnp.dot(xn2, w1_t_ref[...],
                 preferred_element_type=jnp.float32) + b1_ref[...]
    h1 = gelu_exact(h1)
    h2 = jnp.dot(h1.astype(cdt), w2_t_ref[...],
                 preferred_element_type=jnp.float32) + b2_ref[...]
    out = x2 + h2                                             # residual 2

    out_ref[...] = out.reshape(blk_b, S, H).astype(out_ref.dtype)
    if with_weights:
        # single write of the averaged weights (review item 4)
        attn_ref[...] = (p_sum * jnp.float32(1.0 / num_heads)).astype(attn_ref.dtype)


# ----------------------------------------------------------------------------
# Host-side helpers
# ----------------------------------------------------------------------------
def _vmem_limit_bytes():
    """3/4 of physical VMEM: ~48 MiB on v7x, 96 MiB on v5e/v6e, 48 MiB fallback."""
    cap = None
    try:
        cap = getattr(pltpu.get_tpu_info(), "vmem_capacity_bytes", None)
    except Exception:
        cap = None
    if not cap:
        cap = 64 * 1024 * 1024
    return min((int(cap) * 3) // 4, 100 * 1024 * 1024)


def _pick_batch_block(B, S, max_rows=1024):
    """Batch rows per grid step: <= max_rows folded rows, and >= 2 grid steps
    whenever B >= 2 so a v7x megacore can shard the 'parallel' grid axis."""
    rows_budget = max(1, max_rows // max(S, 1))
    target = -(-B // 2) if B >= 2 else B           # ceil(B/2)
    return max(1, min(B, rows_budget, target))


def prepare_block_params(params, num_heads, matmul_dtype=jnp.bfloat16):
    """One-time weight prep (transpose, bf16 cast, fold 1/sqrt(hd) into Wq/bq).

    Call once (or under jit, where it constant-folds); block_forward then only
    streams the prepared tensors (review item: hoist weight prep)."""
    H = params["ln1_g"].shape[0]
    hd = H // num_heads
    scale = float(hd) ** -0.5
    f32 = jnp.float32

    wq, wk, wv = jnp.split(params["in_proj_w"], 3, axis=0)    # each (H, H)
    bq, bk, bv = jnp.split(params["in_proj_b"], 3, axis=0)    # each (H,)

    def r2(v):                 # 1-D params -> (1, D) f32 for TPU layout
        return v.reshape(1, -1).astype(f32)

    def wt(w):                 # weights pre-transposed, matmul dtype (bf16)
        return w.T.astype(matmul_dtype)

    return (
        r2(params["ln1_g"]), r2(params["ln1_b"]),
        (wq * scale).T.astype(matmul_dtype), wt(wk), wt(wv),
        r2(bq * scale), r2(bk), r2(bv),
        wt(params["out_proj_w"]), r2(params["out_proj_b"]),
        r2(params["ln2_g"]), r2(params["ln2_b"]),
        wt(params["fc1_w"]), r2(params["fc1_b"]),
        wt(params["fc2_w"]), r2(params["fc2_b"]),
    )


def block_forward(x_sbh, prepared, num_heads, *, return_weights=True,
                  batch_block=None, max_rows=1024):
    S, B, H = x_sbh.shape
    assert H % num_heads == 0
    f32 = jnp.float32

    # One host-side relayout to batch-major.  Mosaic cannot lower the
    # (S,B,H)->(B,S,H) permute (or non-leading-batch dot_general) inside the
    # kernel, so it is done once here in XLA.
    # TODO(synk): remove once in-kernel batch-axis relayout is supported.
    x_bsh = jnp.transpose(x_sbh, (1, 0, 2)).astype(f32)

    bb = batch_block if batch_block is not None else _pick_batch_block(B, S, max_rows)
    grid_len = pl.cdiv(B, bb)
    b_pad = grid_len * bb
    if b_pad != B:                                     # pad instead of asserting divisibility
        x_bsh = jnp.pad(x_bsh, ((0, b_pad - B), (0, 0), (0, 0)))

    def const_spec(a):                                 # whole-array weight block
        nd = a.ndim
        return pl.BlockSpec(a.shape, lambda i, _nd=nd: (0,) * _nd)

    in_specs = [pl.BlockSpec((bb, S, H), lambda i: (i, 0, 0))]
    in_specs += [const_spec(a) for a in prepared]

    out_specs = [pl.BlockSpec((bb, S, H), lambda i: (i, 0, 0))]
    out_shape = [jax.ShapeDtypeStruct((b_pad, S, H), f32)]
    if return_weights:
        out_specs.append(pl.BlockSpec((bb, S, S), lambda i: (i, 0, 0)))
        out_shape.append(jax.ShapeDtypeStruct((b_pad, S, S), f32))

    kernel = functools.partial(_block_kernel, num_heads=num_heads,
                               with_weights=return_weights)

    res = pl.pallas_call(
        kernel,
        grid=(grid_len,),
        in_specs=in_specs,
        out_specs=out_specs,
        out_shape=out_shape,
        compiler_params=pltpu.CompilerParams(
            dimension_semantics=("parallel",),
            vmem_limit_bytes=_vmem_limit_bytes()),
    )(x_bsh, *prepared)

    if return_weights:
        out_bsh, attn_w = res
    else:
        (out_bsh,) = res
        attn_w = None

    out_sbh = jnp.transpose(out_bsh[:B], (1, 0, 2))    # back to (S, B, H)
    if return_weights:
        return out_sbh, attn_w[:B]
    return out_sbh


# ----------------------------------------------------------------------------
# Deterministic parameter init (matches the PyTorch module's shapes / init)
# ----------------------------------------------------------------------------
def init_params(key, hidden, mlp_dim):
    ks = jax.random.split(key, 6)

    def xavier(k, shape):
        fan_out, fan_in = shape
        lim = (6.0 / (fan_in + fan_out)) ** 0.5
        return jax.random.uniform(k, shape, jnp.float32, -lim, lim)

    return dict(
        ln1_g=jnp.ones((hidden,), jnp.float32),
        ln1_b=jnp.zeros((hidden,), jnp.float32),
        in_proj_w=xavier(ks[0], (3 * hidden, hidden)),
        in_proj_b=jnp.zeros((3 * hidden,), jnp.float32),
        out_proj_w=xavier(ks[1], (hidden, hidden)),
        out_proj_b=jnp.zeros((hidden,), jnp.float32),
        ln2_g=jnp.ones((hidden,), jnp.float32),
        ln2_b=jnp.zeros((hidden,), jnp.float32),
        fc1_w=xavier(ks[2], (mlp_dim, hidden)),
        fc1_b=1e-6 * jax.random.normal(ks[3], (mlp_dim,), jnp.float32),
        fc2_w=xavier(ks[4], (hidden, mlp_dim)),
        fc2_b=1e-6 * jax.random.normal(ks[5], (hidden,), jnp.float32),
    )


# ----------------------------------------------------------------------------
# Pure-JAX f32 reference (same math, exact softmax/erf) for a sanity check
# ----------------------------------------------------------------------------
def _reference(x_sbh, params, num_heads):
    eps = 1e-6
    S, B, H = x_sbh.shape
    hd = H // num_heads
    x = jnp.transpose(x_sbh, (1, 0, 2)).astype(jnp.float32)  # (B, S, H)

    def ln(v, g, b):
        mu = jnp.mean(v, -1, keepdims=True)
        var = jnp.mean((v - mu) ** 2, -1, keepdims=True)
        return (v - mu) * jax.lax.rsqrt(var + eps) * g + b

    h = x
    xn = ln(x, params["ln1_g"], params["ln1_b"])
    wq, wk, wv = jnp.split(params["in_proj_w"], 3, 0)
    bq, bk, bv = jnp.split(params["in_proj_b"], 3, 0)
    q = (xn @ wq.T + bq) / jnp.sqrt(jnp.float32(hd))
    k = xn @ wk.T + bk
    v = xn @ wv.T + bv
    q = q.reshape(B, S, num_heads, hd).transpose(0, 2, 1, 3)
    k = k.reshape(B, S, num_heads, hd).transpose(0, 2, 1, 3)
    v = v.reshape(B, S, num_heads, hd).transpose(0, 2, 1, 3)
    s = jnp.einsum("bhqd,bhkd->bhqk", q, k)
    p = jax.nn.softmax(s, -1)
    o = jnp.einsum("bhqk,bhkd->bhqd", p, v).transpose(0, 2, 1, 3).reshape(B, S, H)
    o = o @ params["out_proj_w"].T + params["out_proj_b"]
    x2 = h + o
    xn2 = ln(x2, params["ln2_g"], params["ln2_b"])
    h1 = jax.nn.gelu(xn2 @ params["fc1_w"].T + params["fc1_b"], approximate=False)
    h2 = h1 @ params["fc2_w"].T + params["fc2_b"]
    out = x2 + h2
    return jnp.transpose(out, (1, 0, 2)), jnp.mean(p, axis=1)


if __name__ == "__main__":
    hidden_size, mlp_dim, nb_heads, nb_patches, batch = 32, 64, 4, 8, 2

    key = jax.random.PRNGKey(0)
    kx, kp = jax.random.split(key)
    x = jax.random.normal(kx, (nb_patches, batch, hidden_size), jnp.float32)
    params = init_params(kp, hidden_size, mlp_dim)

    # one-time weight prep (transpose / bf16 / scale fold), outside the forward
    prepared = prepare_block_params(params, nb_heads)

    out, attn_w = block_forward(x, prepared, nb_heads)
    out = jax.block_until_ready(out)
    attn_w = jax.block_until_ready(attn_w)

    ref_out, ref_w = _reference(x, params, nb_heads)

    assert out.shape == (nb_patches, batch, hidden_size)
    assert attn_w.shape == (batch, nb_patches, nb_patches)
    assert bool(jnp.all(jnp.isfinite(out)))
    # Tolerances account for bf16 matmul operands (f32 accumulation).
    err_out = float(jnp.max(jnp.abs(out - ref_out)))
    err_w = float(jnp.max(jnp.abs(attn_w - ref_w)))
    assert err_out < 5e-2, err_out
    assert err_w < 2e-2, err_w
    assert bool(jnp.allclose(attn_w.sum(-1), 1.0, atol=1e-3))   # exact softmax

    # TODO(synk): dropout (Mlp p=0.2 and the MHA dropout slot) is eval-mode identity.
    print("KERNEL_OK")
</pallas_src>

<mosaic_0001>
module attributes {stable_mosaic.version = 11 : i64} {
  func.func @_block_kernel(%arg0: i32, %arg1: memref<1x8x32xf32, #tpu.memory_space<vmem>>, %arg2: memref<1x32xf32, #tpu.memory_space<vmem>>, %arg3: memref<1x32xf32, #tpu.memory_space<vmem>>, %arg4: memref<32x32xbf16, #tpu.memory_space<vmem>>, %arg5: memref<32x32xbf16, #tpu.memory_space<vmem>>, %arg6: memref<32x32xbf16, #tpu.memory_space<vmem>>, %arg7: memref<1x32xf32, #tpu.memory_space<vmem>>, %arg8: memref<1x32xf32, #tpu.memory_space<vmem>>, %arg9: memref<1x32xf32, #tpu.memory_space<vmem>>, %arg10: memref<32x32xbf16, #tpu.memory_space<vmem>>, %arg11: memref<1x32xf32, #tpu.memory_space<vmem>>, %arg12: memref<1x32xf32, #tpu.memory_space<vmem>>, %arg13: memref<1x32xf32, #tpu.memory_space<vmem>>, %arg14: memref<32x64xbf16, #tpu.memory_space<vmem>>, %arg15: memref<1x64xf32, #tpu.memory_space<vmem>>, %arg16: memref<64x32xbf16, #tpu.memory_space<vmem>>, %arg17: memref<1x32xf32, #tpu.memory_space<vmem>>, %arg18: memref<1x8x32xf32, #tpu.memory_space<vmem>>, %arg19: memref<1x8x8xf32, #tpu.memory_space<vmem>>) attributes {dimension_semantics = [#tpu.dimension_semantics<parallel>], iteration_bounds = array<i64: 2>, scalar_prefetch = 0 : i64, scratch_operands = 0 : i64, tpu.core_type = #tpu.core_type<tc>, window_params = [{transform_indices = @transform_0, window_bounds = array<i64: 1, 8, 32>}, {pipeline_mode = #tpu.pipeline_mode<synchronous>, transform_indices = @transform_1, window_bounds = array<i64: 1, 32>}, {pipeline_mode = #tpu.pipeline_mode<synchronous>, transform_indices = @transform_2, window_bounds = array<i64: 1, 32>}, {pipeline_mode = #tpu.pipeline_mode<synchronous>, transform_indices = @transform_3, window_bounds = array<i64: 32, 32>}, {pipeline_mode = #tpu.pipeline_mode<synchronous>, transform_indices = @transform_4, window_bounds = array<i64: 32, 32>}, {pipeline_mode = #tpu.pipeline_mode<synchronous>, transform_indices = @transform_5, window_bounds = array<i64: 32, 32>}, {pipeline_mode = #tpu.pipeline_mode<synchronous>, transform_indices = @transform_6, window_bounds = array<i64: 1, 32>}, {pipeline_mode = #tpu.pipeline_mode<synchronous>, transform_indices = @transform_7, window_bounds = array<i64: 1, 32>}, {pipeline_mode = #tpu.pipeline_mode<synchronous>, transform_indices = @transform_8, window_bounds = array<i64: 1, 32>}, {pipeline_mode = #tpu.pipeline_mode<synchronous>, transform_indices = @transform_9, window_bounds = array<i64: 32, 32>}, {pipeline_mode = #tpu.pipeline_mode<synchronous>, transform_indices = @transform_10, window_bounds = array<i64: 1, 32>}, {pipeline_mode = #tpu.pipeline_mode<synchronous>, transform_indices = @transform_11, window_bounds = array<i64: 1, 32>}, {pipeline_mode = #tpu.pipeline_mode<synchronous>, transform_indices = @transform_12, window_bounds = array<i64: 1, 32>}, {pipeline_mode = #tpu.pipeline_mode<synchronous>, transform_indices = @transform_13, window_bounds = array<i64: 32, 64>}, {pipeline_mode = #tpu.pipeline_mode<synchronous>, transform_indices = @transform_14, window_bounds = array<i64: 1, 64>}, {pipeline_mode = #tpu.pipeline_mode<synchronous>, transform_indices = @transform_15, window_bounds = array<i64: 64, 32>}, {pipeline_mode = #tpu.pipeline_mode<synchronous>, transform_indices = @transform_16, window_bounds = array<i64: 1, 32>}, {transform_indices = @transform_17, window_bounds = array<i64: 1, 8, 32>}, {transform_indices = @transform_18, window_bounds = array<i64: 1, 8, 8>}]} {
    %c0 = arith.constant 0 : index
    %c0_0 = arith.constant 0 : index
    %c0_1 = arith.constant 0 : index
    %0 = vector.load %arg1[%c0, %c0_0, %c0_1] : memref<1x8x32xf32, #tpu.memory_space<vmem>>, vector<1x8x32xf32>
    %1 = vector.shape_cast %0 : vector<1x8x32xf32> to vector<8x32xf32>
    %cst = arith.constant dense<0.000000e+00> : vector<8xf32>
    %2 = vector.multi_reduction <add>, %1, %cst [1] : vector<8x32xf32> to vector<8xf32>
    %3 = vector.shape_cast %2 : vector<8xf32> to vector<8x1xf32>
    %cst_2 = arith.constant 3.200000e+01 : f32
    %4 = vector.broadcast %cst_2 : f32 to vector<8x1xf32>
    %5 = arith.divf %3, %4 : vector<8x1xf32>
    %6 = vector.broadcast %5 : vector<8x1xf32> to vector<8x32xf32>
    %7 = arith.subf %1, %6 : vector<8x32xf32>
    %8 = arith.mulf %7, %7 : vector<8x32xf32>
    %cst_3 = arith.constant dense<0.000000e+00> : vector<8xf32>
    %9 = vector.multi_reduction <add>, %8, %cst_3 [1] : vector<8x32xf32> to vector<8xf32>
    %10 = vector.shape_cast %9 : vector<8xf32> to vector<8x1xf32>
    %cst_4 = arith.constant 3.200000e+01 : f32
    %11 = vector.broadcast %cst_4 : f32 to vector<8x1xf32>
    %12 = arith.divf %10, %11 : vector<8x1xf32>
    %cst_5 = arith.constant 9.99999997E-7 : f32
    %13 = vector.broadcast %cst_5 : f32 to vector<8x1xf32>
    %14 = arith.addf %12, %13 : vector<8x1xf32>
    %15 = math.rsqrt %14 : vector<8x1xf32>
    %16 = vector.broadcast %15 : vector<8x1xf32> to vector<8x32xf32>
    %17 = arith.mulf %7, %16 : vector<8x32xf32>
    %c0_6 = arith.constant 0 : index
    %c0_7 = arith.constant 0 : index
    %18 = vector.load %arg2[%c0_6, %c0_7] : memref<1x32xf32, #tpu.memory_space<vmem>>, vector<1x32xf32>
    %19 = vector.broadcast %18 : vector<1x32xf32> to vector<8x32xf32>
    %20 = arith.mulf %17, %19 : vector<8x32xf32>
    %c0_8 = arith.constant 0 : index
    %c0_9 = arith.constant 0 : index
    %21 = vector.load %arg3[%c0_8, %c0_9] : memref<1x32xf32, #tpu.memory_space<vmem>>, vector<1x32xf32>
    %22 = vector.broadcast %21 : vector<1x32xf32> to vector<8x32xf32>
    %23 = arith.addf %20, %22 : vector<8x32xf32>
    %24 = arith.truncf %23 : vector<8x32xf32> to vector<8x32xbf16>
    %c0_10 = arith.constant 0 : index
    %c0_11 = arith.constant 0 : index
    %25 = vector.load %arg4[%c0_10, %c0_11] : memref<32x32xbf16, #tpu.memory_space<vmem>>, vector<32x32xbf16>
    %cst_12 = arith.constant dense<0.000000e+00> : vector<8x32xf32>
    %26 = tpu.matmul %24, %25, %cst_12 {dimension_numbers = #tpu.dot_dimension_numbers<[1], [0], [0], [1], [0, 0, 1, 1], [], []>} : vector<8x32xbf16>, vector<32x32xbf16>, vector<8x32xf32> -> vector<8x32xf32>
    %c0_13 = arith.constant 0 : index
    %c0_14 = arith.constant 0 : index
    %27 = vector.load %arg7[%c0_13, %c0_14] : memref<1x32xf32, #tpu.memory_space<vmem>>, vector<1x32xf32>
    %28 = vector.broadcast %27 : vector<1x32xf32> to vector<8x32xf32>
    %29 = arith.addf %26, %28 : vector<8x32xf32>
    %30 = vector.shape_cast %29 : vector<8x32xf32> to vector<1x8x32xf32>
    %c0_15 = arith.constant 0 : index
    %c0_16 = arith.constant 0 : index
    %31 = vector.load %arg5[%c0_15, %c0_16] : memref<32x32xbf16, #tpu.memory_space<vmem>>, vector<32x32xbf16>
    %cst_17 = arith.constant dense<0.000000e+00> : vector<8x32xf32>
    %32 = tpu.matmul %24, %31, %cst_17 {dimension_numbers = #tpu.dot_dimension_numbers<[1], [0], [0], [1], [0, 0, 1, 1], [], []>} : vector<8x32xbf16>, vector<32x32xbf16>, vector<8x32xf32> -> vector<8x32xf32>
    %c0_18 = arith.constant 0 : index
    %c0_19 = arith.constant 0 : index
    %33 = vector.load %arg8[%c0_18, %c0_19] : memref<1x32xf32, #tpu.memory_space<vmem>>, vector<1x32xf32>
    %34 = vector.broadcast %33 : vector<1x32xf32> to vector<8x32xf32>
    %35 = arith.addf %32, %34 : vector<8x32xf32>
    %36 = vector.shape_cast %35 : vector<8x32xf32> to vector<1x8x32xf32>
    %c0_20 = arith.constant 0 : index
    %c0_21 = arith.constant 0 : index
    %37 = vector.load %arg6[%c0_20, %c0_21] : memref<32x32xbf16, #tpu.memory_space<vmem>>, vector<32x32xbf16>
    %cst_22 = arith.constant dense<0.000000e+00> : vector<8x32xf32>
    %38 = tpu.matmul %24, %37, %cst_22 {dimension_numbers = #tpu.dot_dimension_numbers<[1], [0], [0], [1], [0, 0, 1, 1], [], []>} : vector<8x32xbf16>, vector<32x32xbf16>, vector<8x32xf32> -> vector<8x32xf32>
    %c0_23 = arith.constant 0 : index
    %c0_24 = arith.constant 0 : index
    %39 = vector.load %arg9[%c0_23, %c0_24] : memref<1x32xf32, #tpu.memory_space<vmem>>, vector<1x32xf32>
    %40 = vector.broadcast %39 : vector<1x32xf32> to vector<8x32xf32>
    %41 = arith.addf %38, %40 : vector<8x32xf32>
    %42 = vector.shape_cast %41 : vector<8x32xf32> to vector<1x8x32xf32>
    %c0_25 = arith.constant 0 : index
    %c0_26 = arith.constant 0 : index
    %43 = vector.load %arg10[%c0_25, %c0_26] : memref<32x32xbf16, #tpu.memory_space<vmem>>, vector<32x32xbf16>
    %cst_27 = arith.constant 0.000000e+00 : f32
    %44 = vector.broadcast %cst_27 : f32 to vector<8x32xf32>
    %cst_28 = arith.constant 0.000000e+00 : f32
    %45 = vector.broadcast %cst_28 : f32 to vector<1x8x8xf32>
    %46 = vector.extract_strided_slice %30 {offsets = [0, 0, 0], sizes = [1, 8, 8], strides = [1, 1, 1]} : vector<1x8x32xf32> to vector<1x8x8xf32>
    %47 = arith.truncf %46 : vector<1x8x8xf32> to vector<1x8x8xbf16>
    %48 = vector.extract_strided_slice %36 {offsets = [0, 0, 0], sizes = [1, 8, 8], strides = [1, 1, 1]} : vector<1x8x32xf32> to vector<1x8x8xf32>
    %49 = arith.truncf %48 : vector<1x8x8xf32> to vector<1x8x8xbf16>
    %50 = vector.extract_strided_slice %42 {offsets = [0, 0, 0], sizes = [1, 8, 8], strides = [1, 1, 1]} : vector<1x8x32xf32> to vector<1x8x8xf32>
    %51 = arith.truncf %50 : vector<1x8x8xf32> to vector<1x8x8xbf16>
    "tpu.trace_start"() <{level = 10 : i32, message = "bqd,bkd->bqk"}> : () -> ()
    %cst_29 = arith.constant dense<0.000000e+00> : vector<1x8x8xf32>
    %52 = tpu.matmul %47, %49, %cst_29 {dimension_numbers = #tpu.dot_dimension_numbers<[2], [2], [1], [1], [0, 0, 0, 1, 1, 1], [0], [0]>} : vector<1x8x8xbf16>, vector<1x8x8xbf16>, vector<1x8x8xf32> -> vector<1x8x8xf32>
    "tpu.trace_stop"() : () -> ()
    %cst_30 = arith.constant dense<0xFF800000> : vector<1x8xf32>
    %53 = vector.multi_reduction <maximumf>, %52, %cst_30 [2] : vector<1x8x8xf32> to vector<1x8xf32>
    %54 = vector.shape_cast %53 : vector<1x8xf32> to vector<1x8x1xf32>
    %55 = vector.broadcast %54 : vector<1x8x1xf32> to vector<1x8x8xf32>
    %56 = arith.subf %52, %55 : vector<1x8x8xf32>
    %57 = math.exp %56 : vector<1x8x8xf32>
    %cst_31 = arith.constant dense<0.000000e+00> : vector<1x8xf32>
    %58 = vector.multi_reduction <add>, %57, %cst_31 [2] : vector<1x8x8xf32> to vector<1x8xf32>
    %59 = vector.shape_cast %58 : vector<1x8xf32> to vector<1x8x1xf32>
    %60 = vector.broadcast %59 : vector<1x8x1xf32> to vector<1x8x8xf32>
    %61 = arith.divf %57, %60 : vector<1x8x8xf32>
    %62 = arith.addf %45, %61 : vector<1x8x8xf32>
    %63 = arith.truncf %61 : vector<1x8x8xf32> to vector<1x8x8xbf16>
    "tpu.trace_start"() <{level = 10 : i32, message = "bqk,bkd->bqd"}> : () -> ()
    %cst_32 = arith.constant dense<0.000000e+00> : vector<1x8x8xf32>
    %64 = tpu.matmul %63, %51, %cst_32 {dimension_numbers = #tpu.dot_dimension_numbers<[2], [1], [1], [2], [0, 0, 0, 1, 1, 2], [0], [0]>} : vector<1x8x8xbf16>, vector<1x8x8xbf16>, vector<1x8x8xf32> -> vector<1x8x8xf32>
    "tpu.trace_stop"() : () -> ()
    %65 = vector.shape_cast %64 : vector<1x8x8xf32> to vector<8x8xf32>
    %66 = arith.truncf %65 : vector<8x8xf32> to vector<8x8xbf16>
    %67 = vector.extract_strided_slice %43 {offsets = [0, 0], sizes = [8, 32], strides = [1, 1]} : vector<32x32xbf16> to vector<8x32xbf16>
    %cst_33 = arith.constant dense<0.000000e+00> : vector<8x32xf32>
    %68 = tpu.matmul %66, %67, %cst_33 {dimension_numbers = #tpu.dot_dimension_numbers<[1], [0], [0], [1], [0, 0, 1, 1], [], []>} : vector<8x8xbf16>, vector<8x32xbf16>, vector<8x32xf32> -> vector<8x32xf32>
    %69 = arith.addf %44, %68 : vector<8x32xf32>
    %70 = vector.extract_strided_slice %30 {offsets = [0, 0, 8], sizes = [1, 8, 8], strides = [1, 1, 1]} : vector<1x8x32xf32> to vector<1x8x8xf32>
    %71 = arith.truncf %70 : vector<1x8x8xf32> to vector<1x8x8xbf16>
    %72 = vector.extract_strided_slice %36 {offsets = [0, 0, 8], sizes = [1, 8, 8], strides = [1, 1, 1]} : vector<1x8x32xf32> to vector<1x8x8xf32>
    %73 = arith.truncf %72 : vector<1x8x8xf32> to vector<1x8x8xbf16>
    %74 = vector.extract_strided_slice %42 {offsets = [0, 0, 8], sizes = [1, 8, 8], strides = [1, 1, 1]} : vector<1x8x32xf32> to vector<1x8x8xf32>
    %75 = arith.truncf %74 : vector<1x8x8xf32> to vector<1x8x8xbf16>
    "tpu.trace_start"() <{level = 10 : i32, message = "bqd,bkd->bqk"}> : () -> ()
    %cst_34 = arith.constant dense<0.000000e+00> : vector<1x8x8xf32>
    %76 = tpu.matmul %71, %73, %cst_34 {dimension_numbers = #tpu.dot_dimension_numbers<[2], [2], [1], [1], [0, 0, 0, 1, 1, 1], [0], [0]>} : vector<1x8x8xbf16>, vector<1x8x8xbf16>, vector<1x8x8xf32> -> vector<1x8x8xf32>
    "tpu.trace_stop"() : () -> ()
    %cst_35 = arith.constant dense<0xFF800000> : vector<1x8xf32>
    %77 = vector.multi_reduction <maximumf>, %76, %cst_35 [2] : vector<1x8x8xf32> to vector<1x8xf32>
    %78 = vector.shape_cast %77 : vector<1x8xf32> to vector<1x8x1xf32>
    %79 = vector.broadcast %78 : vector<1x8x1xf32> to vector<1x8x8xf32>
    %80 = arith.subf %76, %79 : vector<1x8x8xf32>
    %81 = math.exp %80 : vector<1x8x8xf32>
    %cst_36 = arith.constant dense<0.000000e+00> : vector<1x8xf32>
    %82 = vector.multi_reduction <add>, %81, %cst_36 [2] : vector<1x8x8xf32> to vector<1x8xf32>
    %83 = vector.shape_cast %82 : vector<1x8xf32> to vector<1x8x1xf32>
    %84 = vector.broadcast %83 : vector<1x8x1xf32> to vector<1x8x8xf32>
    %85 = arith.divf %81, %84 : vector<1x8x8xf32>
    %86 = arith.addf %62, %85 : vector<1x8x8xf32>
    %87 = arith.truncf %85 : vector<1x8x8xf32> to vector<1x8x8xbf16>
    "tpu.trace_start"() <{level = 10 : i32, message = "bqk,bkd->bqd"}> : () -> ()
    %cst_37 = arith.constant dense<0.000000e+00> : vector<1x8x8xf32>
    %88 = tpu.matmul %87, %75, %cst_37 {dimension_numbers = #tpu.dot_dimension_numbers<[2], [1], [1], [2], [0, 0, 0, 1, 1, 2], [0], [0]>} : vector<1x8x8xbf16>, vector<1x8x8xbf16>, vector<1x8x8xf32> -> vector<1x8x8xf32>
    "tpu.trace_stop"() : () -> ()
    %89 = vector.shape_cast %88 : vector<1x8x8xf32> to vector<8x8xf32>
    %90 = arith.truncf %89 : vector<8x8xf32> to vector<8x8xbf16>
    %91 = vector.extract_strided_slice %43 {offsets = [8, 0], sizes = [8, 32], strides = [1, 1]} : vector<32x32xbf16> to vector<8x32xbf16>
    %cst_38 = arith.constant dense<0.000000e+00> : vector<8x32xf32>
    %92 = tpu.matmul %90, %91, %cst_38 {dimension_numbers = #tpu.dot_dimension_numbers<[1], [0], [0], [1], [0, 0, 1, 1], [], []>} : vector<8x8xbf16>, vector<8x32xbf16>, vector<8x32xf32> -> vector<8x32xf32>
    %93 = arith.addf %69, %92 : vector<8x32xf32>
    %94 = vector.extract_strided_slice %30 {offsets = [0, 0, 16], sizes = [1, 8, 8], strides = [1, 1, 1]} : vector<1x8x32xf32> to vector<1x8x8xf32>
    %95 = arith.truncf %94 : vector<1x8x8xf32> to vector<1x8x8xbf16>
    %96 = vector.extract_strided_slice %36 {offsets = [0, 0, 16], sizes = [1, 8, 8], strides = [1, 1, 1]} : vector<1x8x32xf32> to vector<1x8x8xf32>
    %97 = arith.truncf %96 : vector<1x8x8xf32> to vector<1x8x8xbf16>
    %98 = vector.extract_strided_slice %42 {offsets = [0, 0, 16], sizes = [1, 8, 8], strides = [1, 1, 1]} : vector<1x8x32xf32> to vector<1x8x8xf32>
    %99 = arith.truncf %98 : vector<1x8x8xf32> to vector<1x8x8xbf16>
    "tpu.trace_start"() <{level = 10 : i32, message = "bqd,bkd->bqk"}> : () -> ()
    %cst_39 = arith.constant dense<0.000000e+00> : vector<1x8x8xf32>
    %100 = tpu.matmul %95, %97, %cst_39 {dimension_numbers = #tpu.dot_dimension_numbers<[2], [2], [1], [1], [0, 0, 0, 1, 1, 1], [0], [0]>} : vector<1x8x8xbf16>, vector<1x8x8xbf16>, vector<1x8x8xf32> -> vector<1x8x8xf32>
    "tpu.trace_stop"() : () -> ()
    %cst_40 = arith.constant dense<0xFF800000> : vector<1x8xf32>
    %101 = vector.multi_reduction <maximumf>, %100, %cst_40 [2] : vector<1x8x8xf32> to vector<1x8xf32>
    %102 = vector.shape_cast %101 : vector<1x8xf32> to vector<1x8x1xf32>
    %103 = vector.broadcast %102 : vector<1x8x1xf32> to vector<1x8x8xf32>
    %104 = arith.subf %100, %103 : vector<1x8x8xf32>
    %105 = math.exp %104 : vector<1x8x8xf32>
    %cst_41 = arith.constant dense<0.000000e+00> : vector<1x8xf32>
    %106 = vector.multi_reduction <add>, %105, %cst_41 [2] : vector<1x8x8xf32> to vector<1x8xf32>
    %107 = vector.shape_cast %106 : vector<1x8xf32> to vector<1x8x1xf32>
    %108 = vector.broadcast %107 : vector<1x8x1xf32> to vector<1x8x8xf32>
    %109 = arith.divf %105, %108 : vector<1x8x8xf32>
    %110 = arith.addf %86, %109 : vector<1x8x8xf32>
    %111 = arith.truncf %109 : vector<1x8x8xf32> to vector<1x8x8xbf16>
    "tpu.trace_start"() <{level = 10 : i32, message = "bqk,bkd->bqd"}> : () -> ()
    %cst_42 = arith.constant dense<0.000000e+00> : vector<1x8x8xf32>
    %112 = tpu.matmul %111, %99, %cst_42 {dimension_numbers = #tpu.dot_dimension_numbers<[2], [1], [1], [2], [0, 0, 0, 1, 1, 2], [0], [0]>} : vector<1x8x8xbf16>, vector<1x8x8xbf16>, vector<1x8x8xf32> -> vector<1x8x8xf32>
    "tpu.trace_stop"() : () -> ()
    %113 = vector.shape_cast %112 : vector<1x8x8xf32> to vector<8x8xf32>
    %114 = arith.truncf %113 : vector<8x8xf32> to vector<8x8xbf16>
    %115 = vector.extract_strided_slice %43 {offsets = [16, 0], sizes = [8, 32], strides = [1, 1]} : vector<32x32xbf16> to vector<8x32xbf16>
    %cst_43 = arith.constant dense<0.000000e+00> : vector<8x32xf32>
    %116 = tpu.matmul %114, %115, %cst_43 {dimension_numbers = #tpu.dot_dimension_numbers<[1], [0], [0], [1], [0, 0, 1, 1], [], []>} : vector<8x8xbf16>, vector<8x32xbf16>, vector<8x32xf32> -> vector<8x32xf32>
    %117 = arith.addf %93, %116 : vector<8x32xf32>
    %118 = vector.extract_strided_slice %30 {offsets = [0, 0, 24], sizes = [1, 8, 8], strides = [1, 1, 1]} : vector<1x8x32xf32> to vector<1x8x8xf32>
    %119 = arith.truncf %118 : vector<1x8x8xf32> to vector<1x8x8xbf16>
    %120 = vector.extract_strided_slice %36 {offsets = [0, 0, 24], sizes = [1, 8, 8], strides = [1, 1, 1]} : vector<1x8x32xf32> to vector<1x8x8xf32>
    %121 = arith.truncf %120 : vector<1x8x8xf32> to vector<1x8x8xbf16>
    %122 = vector.extract_strided_slice %42 {offsets = [0, 0, 24], sizes = [1, 8, 8], strides = [1, 1, 1]} : vector<1x8x32xf32> to vector<1x8x8xf32>
    %123 = arith.truncf %122 : vector<1x8x8xf32> to vector<1x8x8xbf16>
    "tpu.trace_start"() <{level = 10 : i32, message = "bqd,bkd->bqk"}> : () -> ()
    %cst_44 = arith.constant dense<0.000000e+00> : vector<1x8x8xf32>
    %124 = tpu.matmul %119, %121, %cst_44 {dimension_numbers = #tpu.dot_dimension_numbers<[2], [2], [1], [1], [0, 0, 0, 1, 1, 1], [0], [0]>} : vector<1x8x8xbf16>, vector<1x8x8xbf16>, vector<1x8x8xf32> -> vector<1x8x8xf32>
    "tpu.trace_stop"() : () -> ()
    %cst_45 = arith.constant dense<0xFF800000> : vector<1x8xf32>
    %125 = vector.multi_reduction <maximumf>, %124, %cst_45 [2] : vector<1x8x8xf32> to vector<1x8xf32>
    %126 = vector.shape_cast %125 : vector<1x8xf32> to vector<1x8x1xf32>
    %127 = vector.broadcast %126 : vector<1x8x1xf32> to vector<1x8x8xf32>
    %128 = arith.subf %124, %127 : vector<1x8x8xf32>
    %129 = math.exp %128 : vector<1x8x8xf32>
    %cst_46 = arith.constant dense<0.000000e+00> : vector<1x8xf32>
    %130 = vector.multi_reduction <add>, %129, %cst_46 [2] : vector<1x8x8xf32> to vector<1x8xf32>
    %131 = vector.shape_cast %130 : vector<1x8xf32> to vector<1x8x1xf32>
    %132 = vector.broadcast %131 : vector<1x8x1xf32> to vector<1x8x8xf32>
    %133 = arith.divf %129, %132 : vector<1x8x8xf32>
    %134 = arith.addf %110, %133 : vector<1x8x8xf32>
    %135 = arith.truncf %133 : vector<1x8x8xf32> to vector<1x8x8xbf16>
    "tpu.trace_start"() <{level = 10 : i32, message = "bqk,bkd->bqd"}> : () -> ()
    %cst_47 = arith.constant dense<0.000000e+00> : vector<1x8x8xf32>
    %136 = tpu.matmul %135, %123, %cst_47 {dimension_numbers = #tpu.dot_dimension_numbers<[2], [1], [1], [2], [0, 0, 0, 1, 1, 2], [0], [0]>} : vector<1x8x8xbf16>, vector<1x8x8xbf16>, vector<1x8x8xf32> -> vector<1x8x8xf32>
    "tpu.trace_stop"() : () -> ()
    %137 = vector.shape_cast %136 : vector<1x8x8xf32> to vector<8x8xf32>
    %138 = arith.truncf %137 : vector<8x8xf32> to vector<8x8xbf16>
    %139 = vector.extract_strided_slice %43 {offsets = [24, 0], sizes = [8, 32], strides = [1, 1]} : vector<32x32xbf16> to vector<8x32xbf16>
    %cst_48 = arith.constant dense<0.000000e+00> : vector<8x32xf32>
    %140 = tpu.matmul %138, %139, %cst_48 {dimension_numbers = #tpu.dot_dimension_numbers<[1], [0], [0], [1], [0, 0, 1, 1], [], []>} : vector<8x8xbf16>, vector<8x32xbf16>, vector<8x32xf32> -> vector<8x32xf32>
    %141 = arith.addf %117, %140 : vector<8x32xf32>
    %142 = arith.addf %1, %141 : vector<8x32xf32>
    %c0_49 = arith.constant 0 : index
    %c0_50 = arith.constant 0 : index
    %143 = vector.load %arg11[%c0_49, %c0_50] : memref<1x32xf32, #tpu.memory_space<vmem>>, vector<1x32xf32>
    %144 = vector.broadcast %143 : vector<1x32xf32> to vector<8x32xf32>
    %145 = arith.addf %142, %144 : vector<8x32xf32>
    %cst_51 = arith.constant dense<0.000000e+00> : vector<8xf32>
    %146 = vector.multi_reduction <add>, %145, %cst_51 [1] : vector<8x32xf32> to vector<8xf32>
    %147 = vector.shape_cast %146 : vector<8xf32> to vector<8x1xf32>
    %cst_52 = arith.constant 3.200000e+01 : f32
    %148 = vector.broadcast %cst_52 : f32 to vector<8x1xf32>
    %149 = arith.divf %147, %148 : vector<8x1xf32>
    %150 = vector.broadcast %149 : vector<8x1xf32> to vector<8x32xf32>
    %151 = arith.subf %145, %150 : vector<8x32xf32>
    %152 = arith.mulf %151, %151 : vector<8x32xf32>
    %cst_53 = arith.constant dense<0.000000e+00> : vector<8xf32>
    %153 = vector.multi_reduction <add>, %152, %cst_53 [1] : vector<8x32xf32> to vector<8xf32>
    %154 = vector.shape_cast %153 : vector<8xf32> to vector<8x1xf32>
    %cst_54 = arith.constant 3.200000e+01 : f32
    %155 = vector.broadcast %cst_54 : f32 to vector<8x1xf32>
    %156 = arith.divf %154, %155 : vector<8x1xf32>
    %cst_55 = arith.constant 9.99999997E-7 : f32
    %157 = vector.broadcast %cst_55 : f32 to vector<8x1xf32>
    %158 = arith.addf %156, %157 : vector<8x1xf32>
    %159 = math.rsqrt %158 : vector<8x1xf32>
    %160 = vector.broadcast %159 : vector<8x1xf32> to vector<8x32xf32>
    %161 = arith.mulf %151, %160 : vector<8x32xf32>
    %c0_56 = arith.constant 0 : index
    %c0_57 = arith.constant 0 : index
    %162 = vector.load %arg12[%c0_56, %c0_57] : memref<1x32xf32, #tpu.memory_space<vmem>>, vector<1x32xf32>
    %163 = vector.broadcast %162 : vector<1x32xf32> to vector<8x32xf32>
    %164 = arith.mulf %161, %163 : vector<8x32xf32>
    %c0_58 = arith.constant 0 : index
    %c0_59 = arith.constant 0 : index
    %165 = vector.load %arg13[%c0_58, %c0_59] : memref<1x32xf32, #tpu.memory_space<vmem>>, vector<1x32xf32>
    %166 = vector.broadcast %165 : vector<1x32xf32> to vector<8x32xf32>
    %167 = arith.addf %164, %166 : vector<8x32xf32>
    %168 = arith.truncf %167 : vector<8x32xf32> to vector<8x32xbf16>
    %c0_60 = arith.constant 0 : index
    %c0_61 = arith.constant 0 : index
    %169 = vector.load %arg14[%c0_60, %c0_61] : memref<32x64xbf16, #tpu.memory_space<vmem>>, vector<32x64xbf16>
    %cst_62 = arith.constant dense<0.000000e+00> : vector<8x64xf32>
    %170 = tpu.matmul %168, %169, %cst_62 {dimension_numbers = #tpu.dot_dimension_numbers<[1], [0], [0], [1], [0, 0, 1, 1], [], []>} : vector<8x32xbf16>, vector<32x64xbf16>, vector<8x64xf32> -> vector<8x64xf32>
    %c0_63 = arith.constant 0 : index
    %c0_64 = arith.constant 0 : index
    %171 = vector.load %arg15[%c0_63, %c0_64] : memref<1x64xf32, #tpu.memory_space<vmem>>, vector<1x64xf32>
    %172 = vector.broadcast %171 : vector<1x64xf32> to vector<8x64xf32>
    %173 = arith.addf %170, %172 : vector<8x64xf32>
    %cst_65 = arith.constant 5.000000e-01 : f32
    %174 = vector.broadcast %cst_65 : f32 to vector<8x64xf32>
    %175 = arith.mulf %174, %173 : vector<8x64xf32>
    %cst_66 = arith.constant 0.707106769 : f32
    %176 = vector.broadcast %cst_66 : f32 to vector<8x64xf32>
    %177 = arith.mulf %173, %176 : vector<8x64xf32>
    %cst_67 = arith.constant 0.000000e+00 : f32
    %178 = vector.broadcast %cst_67 : f32 to vector<8x64xf32>
    %179 = arith.cmpf olt, %177, %178 : vector<8x64xf32>
    %cst_68 = arith.constant -1.000000e+00 : f32
    %cst_69 = arith.constant 1.000000e+00 : f32
    %180 = vector.broadcast %cst_68 : f32 to vector<8x64xf32>
    %181 = vector.broadcast %cst_69 : f32 to vector<8x64xf32>
    %182 = arith.select %179, %180, %181 : vector<8x64xi1>, vector<8x64xf32>
    %183 = arith.mulf %177, %182 : vector<8x64xf32>
    %cst_70 = arith.constant 0.327591091 : f32
    %184 = vector.broadcast %cst_70 : f32 to vector<8x64xf32>
    %185 = arith.mulf %184, %183 : vector<8x64xf32>
    %cst_71 = arith.constant 1.000000e+00 : f32
    %186 = vector.broadcast %cst_71 : f32 to vector<8x64xf32>
    %187 = arith.addf %186, %185 : vector<8x64xf32>
    %cst_72 = arith.constant 1.000000e+00 : f32
    %188 = vector.broadcast %cst_72 : f32 to vector<8x64xf32>
    %189 = arith.divf %188, %187 : vector<8x64xf32>
    %cst_73 = arith.constant 1.06140542 : f32
    %190 = vector.broadcast %cst_73 : f32 to vector<8x64xf32>
    %191 = arith.mulf %190, %189 : vector<8x64xf32>
    %cst_74 = arith.constant -1.45315206 : f32
    %192 = vector.broadcast %cst_74 : f32 to vector<8x64xf32>
    %193 = arith.addf %191, %192 : vector<8x64xf32>
    %194 = arith.mulf %193, %189 : vector<8x64xf32>
    %cst_75 = arith.constant 1.42141378 : f32
    %195 = vector.broadcast %cst_75 : f32 to vector<8x64xf32>
    %196 = arith.addf %194, %195 : vector<8x64xf32>
    %197 = arith.mulf %196, %189 : vector<8x64xf32>
    %cst_76 = arith.constant -0.284496725 : f32
    %198 = vector.broadcast %cst_76 : f32 to vector<8x64xf32>
    %199 = arith.addf %197, %198 : vector<8x64xf32>
    %200 = arith.mulf %199, %189 : vector<8x64xf32>
    %cst_77 = arith.constant 0.254829586 : f32
    %201 = vector.broadcast %cst_77 : f32 to vector<8x64xf32>
    %202 = arith.addf %200, %201 : vector<8x64xf32>
    %203 = arith.mulf %202, %189 : vector<8x64xf32>
    %cst_78 = arith.constant 0.000000e+00 : f32
    %204 = vector.broadcast %cst_78 : f32 to vector<8x64xf32>
    %205 = arith.subf %204, %183 : vector<8x64xf32>
    %206 = arith.mulf %205, %183 : vector<8x64xf32>
    %207 = math.exp %206 : vector<8x64xf32>
    %208 = arith.mulf %203, %207 : vector<8x64xf32>
    %cst_79 = arith.constant 1.000000e+00 : f32
    %209 = vector.broadcast %cst_79 : f32 to vector<8x64xf32>
    %210 = arith.subf %209, %208 : vector<8x64xf32>
    %211 = arith.mulf %182, %210 : vector<8x64xf32>
    %cst_80 = arith.constant 1.000000e+00 : f32
    %212 = vector.broadcast %cst_80 : f32 to vector<8x64xf32>
    %213 = arith.addf %212, %211 : vector<8x64xf32>
    %214 = arith.mulf %175, %213 : vector<8x64xf32>
    %215 = arith.truncf %214 : vector<8x64xf32> to vector<8x64xbf16>
    %c0_81 = arith.constant 0 : index
    %c0_82 = arith.constant 0 : index
    %216 = vector.load %arg16[%c0_81, %c0_82] : memref<64x32xbf16, #tpu.memory_space<vmem>>, vector<64x32xbf16>
    %cst_83 = arith.constant dense<0.000000e+00> : vector<8x32xf32>
    %217 = tpu.matmul %215, %216, %cst_83 {dimension_numbers = #tpu.dot_dimension_numbers<[1], [0], [0], [1], [0, 0, 1, 1], [], []>} : vector<8x64xbf16>, vector<64x32xbf16>, vector<8x32xf32> -> vector<8x32xf32>
    %c0_84 = arith.constant 0 : index
    %c0_85 = arith.constant 0 : index
    %218 = vector.load %arg17[%c0_84, %c0_85] : memref<1x32xf32, #tpu.memory_space<vmem>>, vector<1x32xf32>
    %219 = vector.broadcast %218 : vector<1x32xf32> to vector<8x32xf32>
    %220 = arith.addf %217, %219 : vector<8x32xf32>
    %221 = arith.addf %145, %220 : vector<8x32xf32>
    %222 = vector.shape_cast %221 : vector<8x32xf32> to vector<1x8x32xf32>
    %c0_86 = arith.constant 0 : index
    %c0_87 = arith.constant 0 : index
    %c0_88 = arith.constant 0 : index
    %223 = vector.load %arg18[%c0_86, %c0_87, %c0_88] : memref<1x8x32xf32, #tpu.memory_space<vmem>>, vector<1x8x32xf32>
    tpu.vector_store %arg18[%c0_86, %c0_87, %c0_88], %222 {strides = array<i32>} : memref<1x8x32xf32, #tpu.memory_space<vmem>>, vector<1x8x32xf32>,
    %cst_89 = arith.constant 2.500000e-01 : f32
    %224 = vector.broadcast %cst_89 : f32 to vector<1x8x8xf32>
    %225 = arith.mulf %134, %224 : vector<1x8x8xf32>
    %c0_90 = arith.constant 0 : index
    %c0_91 = arith.constant 0 : index
    %c0_92 = arith.constant 0 : index
    %226 = vector.load %arg19[%c0_90, %c0_91, %c0_92] : memref<1x8x8xf32, #tpu.memory_space<vmem>>, vector<1x8x8xf32>
    tpu.vector_store %arg19[%c0_90, %c0_91, %c0_92], %225 {strides = array<i32>} : memref<1x8x8xf32, #tpu.memory_space<vmem>>, vector<1x8x8xf32>,
    return
  }
  func.func @transform_0(%arg0: i32) -> (i32, i32, i32) {
    %c0_i32 = arith.constant 0 : i32
    %c0_i32_0 = arith.constant 0 : i32
    %c0_i32_1 = arith.constant 0 : i32
    return %arg0, %c0_i32, %c0_i32_0 : i32, i32, i32
  }
  func.func @transform_1(%arg0: i32) -> (i32, i32) {
    %c0_i32 = arith.constant 0 : i32
    %c0_i32_0 = arith.constant 0 : i32
    %c0_i32_1 = arith.constant 0 : i32
    return %c0_i32, %c0_i32_0 : i32, i32
  }
  func.func @transform_2(%arg0: i32) -> (i32, i32) {
    %c0_i32 = arith.constant 0 : i32
    %c0_i32_0 = arith.constant 0 : i32
    %c0_i32_1 = arith.constant 0 : i32
    return %c0_i32, %c0_i32_0 : i32, i32
  }
  func.func @transform_3(%arg0: i32) -> (i32, i32) {
    %c0_i32 = arith.constant 0 : i32
    %c0_i32_0 = arith.constant 0 : i32
    %c0_i32_1 = arith.constant 0 : i32
    return %c0_i32, %c0_i32_0 : i32, i32
  }
  func.func @transform_4(%arg0: i32) -> (i32, i32) {
    %c0_i32 = arith.constant 0 : i32
    %c0_i32_0 = arith.constant 0 : i32
    %c0_i32_1 = arith.constant 0 : i32
    return %c0_i32, %c0_i32_0 : i32, i32
  }
  func.func @transform_5(%arg0: i32) -> (i32, i32) {
    %c0_i32 = arith.constant 0 : i32
    %c0_i32_0 = arith.constant 0 : i32
    %c0_i32_1 = arith.constant 0 : i32
    return %c0_i32, %c0_i32_0 : i32, i32
  }
  func.func @transform_6(%arg0: i32) -> (i32, i32) {
    %c0_i32 = arith.constant 0 : i32
    %c0_i32_0 = arith.constant 0 : i32
    %c0_i32_1 = arith.constant 0 : i32
    return %c0_i32, %c0_i32_0 : i32, i32
  }
  func.func @transform_7(%arg0: i32) -> (i32, i32) {
    %c0_i32 = arith.constant 0 : i32
    %c0_i32_0 = arith.constant 0 : i32
    %c0_i32_1 = arith.constant 0 : i32
    return %c0_i32, %c0_i32_0 : i32, i32
  }
  func.func @transform_8(%arg0: i32) -> (i32, i32) {
    %c0_i32 = arith.constant 0 : i32
    %c0_i32_0 = arith.constant 0 : i32
    %c0_i32_1 = arith.constant 0 : i32
    return %c0_i32, %c0_i32_0 : i32, i32
  }
  func.func @transform_9(%arg0: i32) -> (i32, i32) {
    %c0_i32 = arith.constant 0 : i32
    %c0_i32_0 = arith.constant 0 : i32
    %c0_i32_1 = arith.constant 0 : i32
    return %c0_i32, %c0_i32_0 : i32, i32
  }
  func.func @transform_10(%arg0: i32) -> (i32, i32) {
    %c0_i32 = arith.constant 0 : i32
    %c0_i32_0 = arith.constant 0 : i32
    %c0_i32_1 = arith.constant 0 : i32
    return %c0_i32, %c0_i32_0 : i32, i32
  }
  func.func @transform_11(%arg0: i32) -> (i32, i32) {
    %c0_i32 = arith.constant 0 : i32
    %c0_i32_0 = arith.constant 0 : i32
    %c0_i32_1 = arith.constant 0 : i32
    return %c0_i32, %c0_i32_0 : i32, i32
  }
  func.func @transform_12(%arg0: i32) -> (i32, i32) {
    %c0_i32 = arith.constant 0 : i32
    %c0_i32_0 = arith.constant 0 : i32
    %c0_i32_1 = arith.constant 0 : i32
    return %c0_i32, %c0_i32_0 : i32, i32
  }
  func.func @transform_13(%arg0: i32) -> (i32, i32) {
    %c0_i32 = arith.constant 0 : i32
    %c0_i32_0 = arith.constant 0 : i32
    %c0_i32_1 = arith.constant 0 : i32
    return %c0_i32, %c0_i32_0 : i32, i32
  }
  func.func @transform_14(%arg0: i32) -> (i32, i32) {
    %c0_i32 = arith.constant 0 : i32
    %c0_i32_0 = arith.constant 0 : i32
    %c0_i32_1 = arith.constant 0 : i32
    return %c0_i32, %c0_i32_0 : i32, i32
  }
  func.func @transform_15(%arg0: i32) -> (i32, i32) {
    %c0_i32 = arith.constant 0 : i32
    %c0_i32_0 = arith.constant 0 : i32
    %c0_i32_1 = arith.constant 0 : i32
    return %c0_i32, %c0_i32_0 : i32, i32
  }
  func.func @transform_16(%arg0: i32) -> (i32, i32) {
    %c0_i32 = arith.constant 0 : i32
    %c0_i32_0 = arith.constant 0 : i32
    %c0_i32_1 = arith.constant 0 : i32
    return %c0_i32, %c0_i32_0 : i32, i32
  }
  func.func @transform_17(%arg0: i32) -> (i32, i32, i32) {
    %c0_i32 = arith.constant 0 : i32
    %c0_i32_0 = arith.constant 0 : i32
    %c0_i32_1 = arith.constant 0 : i32
    return %arg0, %c0_i32, %c0_i32_0 : i32, i32, i32
  }
  func.func @transform_18(%arg0: i32) -> (i32, i32, i32) {
    %c0_i32 = arith.constant 0 : i32
    %c0_i32_0 = arith.constant 0 : i32
    %c0_i32_1 = arith.constant 0 : i32
    return %arg0, %c0_i32, %c0_i32_0 : i32, i32, i32
  }
}

</mosaic_0001>

<llo_original>
// kernel: tpu_custom_call.1
$region0: #{tpu_custom_call.1}
  #allocation0 [shape = 'u32[]', space=smem, size = 0x4, offset = 0x4, fixed_abs, tag = 'smem constant byte address 0x4 - core index']
  #allocation1 [shape = 'u32[144,128]{1,0:T(1,128)}', space=vmem, size = 0x12000, scoped, tag = 'internal scratch']
  %s0 = inlined_call_operand.vmem [shape: f32[2,8,32], index: 0, kind: input, shape index: {}]
  %s1 = inlined_call_operand.vmem [shape: f32[1,32], index: 1, kind: input, shape index: {}]
  %s2 = inlined_call_operand.hbm [shape: f32[1,32], index: 2, kind: input, shape index: {}]
  %s3 = inlined_call_operand.vmem [shape: bf16[32,32], index: 3, kind: input, shape index: {}]
  %s4 = inlined_call_operand.vmem [shape: bf16[32,32], index: 4, kind: input, shape index: {}]
  %s5 = inlined_call_operand.hbm [shape: bf16[32,32], index: 5, kind: input, shape index: {}]
  %s6 = inlined_call_operand.hbm [shape: f32[1,32], index: 6, kind: input, shape index: {}]
  %s7 = inlined_call_operand.hbm [shape: f32[1,32], index: 7, kind: input, shape index: {}]
  %s8 = inlined_call_operand.hbm [shape: f32[1,32], index: 8, kind: input, shape index: {}]
  %s9 = inlined_call_operand.vmem [shape: bf16[32,32], index: 9, kind: input, shape index: {}]
  %s10 = inlined_call_operand.hbm [shape: f32[1,32], index: 10, kind: input, shape index: {}]
  %s11 = inlined_call_operand.hbm [shape: f32[1,32], index: 11, kind: input, shape index: {}]
  %s12 = inlined_call_operand.hbm [shape: f32[1,32], index: 12, kind: input, shape index: {}]
  %s13 = inlined_call_operand.vmem [shape: bf16[32,64], index: 13, kind: input, shape index: {}]
  %s14 = inlined_call_operand.vmem [shape: f32[1,64], index: 14, kind: input, shape index: {}]
  %s15 = inlined_call_operand.vmem [shape: bf16[64,32], index: 15, kind: input, shape index: {}]
  %s16 = inlined_call_operand.vmem [shape: f32[1,32], index: 16, kind: input, shape index: {}]
  %s17 = inlined_call_operand.hbm [shape: f32[2,8,32], index: 17, kind: output, shape index: {0}]
  %s18 = inlined_call_operand.hbm [shape: f32[2,8,8], index: 18, kind: output, shape index: {1}]
  %19 = xla_tuple %s17, %s18
  %s20 = sld [smem:[#allocation0]]
  $region141: #{tpu_custom_call.1} parent=0
    _
  %s22 = ssub.s32 1, %s20
  %s23 = scalar_select 0, %s22, %s20
  $region1: #{tpu_custom_call.1} parent=0
    #allocation2 [shape = 'u8[512]{0}', space=vmem, size = 0x400, scoped, tag = 'input window, operand 2, single buffered']
    #allocation3 [shape = 's32[2]{0}', space=sflag, size = 0x8, scoped, tag = 'scoped memory for tpu_custom_call.1']
    #allocation4 [shape = 's32[2]{0}', space=sflag, size = 0x8, scoped, tag = 'scoped memory for tpu_custom_call.1']
    #allocation5 [shape = 'u8[8192]{0}', space=vmem, size = 0x2000, scoped, tag = 'input window, operand 5, single buffered']
    #allocation6 [shape = 's32[1]{0}', space=sflag, size = 0x4, scoped, tag = 'scoped memory for tpu_custom_call.1']
    #allocation7 [shape = 'u8[512]{0}', space=vmem, size = 0x400, scoped, tag = 'input window, operand 6, single buffered']
    #allocation8 [shape = 'u8[512]{0}', space=vmem, size = 0x400, scoped, tag = 'input window, operand 7, single buffered']
    #allocation9 [shape = 's32[1]{0}', space=sflag, size = 0x4, scoped, tag = 'scoped memory for tpu_custom_call.1']
    #allocation10 [shape = 'u8[512]{0}', space=vmem, size = 0x400, scoped, tag = 'input window, operand 8, single buffered']
    #allocation11 [shape = 'u8[512]{0}', space=vmem, size = 0x400, scoped, tag = 'input window, operand 10, single buffered']
    #allocation12 [shape = 's32[1]{0}', space=sflag, size = 0x4, scoped, tag = 'scoped memory for tpu_custom_call.1']
    #allocation13 [shape = 'u8[512]{0}', space=vmem, size = 0x400, scoped, tag = 'input window, operand 11, single buffered']
    #allocation14 [shape = 'u8[512]{0}', space=vmem, size = 0x400, scoped, tag = 'input window, operand 12, single buffered']
    #allocation15 [shape = 's32[1]{0}', space=sflag, size = 0x4, scoped, tag = 'scoped memory for tpu_custom_call.1']
    #allocation16 [shape = 'u8[8192]{0}', space=vmem, size = 0x2000, scoped, tag = 'output window, operand 0']
    #allocation17 [shape = 'u8[8192]{0}', space=vmem, size = 0x2000, scoped, tag = 'output window, operand 1']
    #allocation18 [shape = 's32[2]{0}', space=sflag, size = 0x8, scoped, tag = 'scoped memory for tpu_custom_call.1']
    %24 = vsyncpa [#allocation3], 0
    %25 = vsyncpa [#allocation6], 0
    %26 = vsyncpa [#allocation9], 0
    %27 = vsyncpa [#allocation12], 0
    %28 = vsyncpa [#allocation15], 0
    %29 = vsyncpa [#allocation4], 0
    %s30 = scalar_lea.sflag [#allocation4], 1
    %31 = vsyncpa %s30, 0
    %32 = vsyncpa [#allocation18], 0
    %s33 = scalar_lea.sflag [#allocation18], 1
    %34 = vsyncpa %s33, 0
    loop: start=0, step=1, limit=4
    $region2: #{tpu_custom_call.1} parent=1 // loop_pre_header
      _
    $region3: #{tpu_custom_call.1} parent=1 // loop_header
      %s36 = sphi 0, %s40
      %p37 = scmp.ge.s32.totalorder %s36, 4
      %s46 = sphi 0, %s48
      %s49 = sphi 0, %s46
      %s50 = sphi 0, %s49
      %s66 = sphi 0, %s50
      %s70 = sphi 0, %s70
      %s72 = sphi 0, %s70
      %s73 = sphi 0, %s72
      %s87 = sphi 0, %s73
      %s91 = sphi 0, %s91
      %s93 = sphi 0, %s91
      %s94 = sphi 0, %s93
      %s108 = sphi 0, %s94
      %s112 = sphi 0, %s112
      %s114 = sphi 0, %s112
      %s115 = sphi 0, %s114
      %s129 = sphi 0, %s115
      %s133 = sphi 0, %s133
      %s135 = sphi 0, %s133
      %s136 = sphi 0, %s135
      %s150 = sphi 0, %s136
      %s154 = sphi 0, %s154
      %s156 = sphi 0, %s154
      %s157 = sphi 0, %s156
      %s171 = sphi 0, %s157
      %s175 = sphi 0, %s175
      %s177 = sphi 0, %s175
      %s178 = sphi 0, %s177
      %s192 = sphi 0, %s178
      %s196 = sphi 0, %s196
      %s198 = sphi 0, %s196
      %s199 = sphi 0, %s198
      %s213 = sphi 0, %s199
      %s217 = sphi 0, %s217
      %s219 = sphi 0, %s217
      %s220 = sphi 0, %s219
      %s234 = sphi 0, %s220
      %s238 = sphi 0, %s238
      %s240 = sphi 0, %s238
      %s241 = sphi 0, %s240
      %s255 = sphi 0, %s241
      %s259 = sphi 0, %s259
      %s261 = sphi 0, %s259
      %s262 = sphi 0, %s261
      %s276 = sphi 0, %s262
      %s280 = sphi 0, %s280
      %s282 = sphi 0, %s280
      %s283 = sphi 0, %s282
      %s297 = sphi 0, %s283
      %s301 = sphi 0, %s301
      %s303 = sphi 0, %s301
      %s304 = sphi 0, %s303
      %s318 = sphi 0, %s304
      %s322 = sphi 0, %s322
      %s324 = sphi 0, %s322
      %s325 = sphi 0, %s324
      %s339 = sphi 0, %s325
      %s343 = sphi 0, %s343
      %s345 = sphi 0, %s343
      %s346 = sphi 0, %s345
      %s360 = sphi 0, %s346
      %s364 = sphi 0, %s364
      %s366 = sphi 0, %s364
      %s367 = sphi 0, %s366
      %s381 = sphi 0, %s367
      %s385 = sphi 0, %s385
      %s387 = sphi 0, %s385
      %s388 = sphi 0, %s387
      %s402 = sphi 0, %s388
      %s408 = sphi 0, %s410
      %s411 = sphi 0, %s408
      %s412 = sphi 0, %s411
      %s428 = sphi 0, %s412
      %s434 = sphi 0, %s436
      %s437 = sphi 0, %s434
      %s438 = sphi 0, %s437
      %s454 = sphi 0, %s438
    $region4: #{tpu_custom_call.1} parent=1 // loop_header_branch
      %39 = sbr.rel (%p37) target = $region8
    $region5: #{tpu_custom_call.1} parent=1 // loop_body
      %s41 = ssub.s32 %s36, 1
      %s42 = ssub.s32 %s36, 2
      %s43 = sadd.s32 %s36, 1
      %s44 = ssub.s32 %s36, %s43
      %p45 = scmp.eq.s32.totalorder %s44, 0
      %s47 = sadd.s32 %s46, 1
      %s48 = scalar_select %p45, %s46, %s47
      %p51 = pneg %p45
      %p52 = scmp.eq.s32.totalorder %s36, 1
      %p53 = por %p51, %p52
      %p54 = scmp.ne.s32.totalorder %s46, %s49
      %p55 = scmp.eq.s32.totalorder %s36, 0
      %p56 = por %p54, %p55
      %p57 = scmp.ne.s32.totalorder %s46, %s49
      %p58 = scmp.eq.s32.totalorder %s41, 1
      %p59 = por %p57, %p58
      %p60 = scmp.ne.s32.totalorder %s49, %s50
      %p61 = scmp.eq.s32.totalorder %s41, 0
      %p62 = por %p60, %p61
      %p63 = scmp.ne.s32.totalorder %s49, %s50
      %p64 = scmp.eq.s32.totalorder %s42, 1
      %p65 = por %p63, %p64
      %p67 = scmp.ne.s32.totalorder %s50, %s66
      %p68 = scmp.eq.s32.totalorder %s42, 0
      %p69 = por %p67, %p68
      %s71 = sadd.s32 %s70, 1
      %p74 = scmp.eq.s32.totalorder %s36, 1
      %p75 = scmp.ne.s32.totalorder %s70, %s72
      %p76 = scmp.eq.s32.totalorder %s36, 0
      %p77 = por %p75, %p76
      %p78 = scmp.ne.s32.totalorder %s70, %s72
      %p79 = scmp.eq.s32.totalorder %s41, 1
      %p80 = por %p78, %p79
      %p81 = scmp.ne.s32.totalorder %s72, %s73
      %p82 = scmp.eq.s32.totalorder %s41, 0
      %p83 = por %p81, %p82
      %p84 = scmp.ne.s32.totalorder %s72, %s73
      %p85 = scmp.eq.s32.totalorder %s42, 1
      %p86 = por %p84, %p85
      %p88 = scmp.ne.s32.totalorder %s73, %s87
      %p89 = scmp.eq.s32.totalorder %s42, 0
      %p90 = por %p88, %p89
      %s92 = sadd.s32 %s91, 1
      %p95 = scmp.eq.s32.totalorder %s36, 1
      %p96 = scmp.ne.s32.totalorder %s91, %s93
      %p97 = scmp.eq.s32.totalorder %s36, 0
      %p98 = por %p96, %p97
      %p99 = scmp.ne.s32.totalorder %s91, %s93
      %p100 = scmp.eq.s32.totalorder %s41, 1
      %p101 = por %p99, %p100
      %p102 = scmp.ne.s32.totalorder %s93, %s94
      %p103 = scmp.eq.s32.totalorder %s41, 0
      %p104 = por %p102, %p103
      %p105 = scmp.ne.s32.totalorder %s93, %s94
      %p106 = scmp.eq.s32.totalorder %s42, 1
      %p107 = por %p105, %p106
      %p109 = scmp.ne.s32.totalorder %s94, %s108
      %p110 = scmp.eq.s32.totalorder %s42, 0
      %p111 = por %p109, %p110
      %s113 = sadd.s32 %s112, 1
      %p116 = scmp.eq.s32.totalorder %s36, 1
      %p117 = scmp.ne.s32.totalorder %s112, %s114
      %p118 = scmp.eq.s32.totalorder %s36, 0
      %p119 = por %p117, %p118
      %p120 = scmp.ne.s32.totalorder %s112, %s114
      %p121 = scmp.eq.s32.totalorder %s41, 1
      %p122 = por %p120, %p121
      %p123 = scmp.ne.s32.totalorder %s114, %s115
      %p124 = scmp.eq.s32.totalorder %s41, 0
      %p125 = por %p123, %p124
      %p126 = scmp.ne.s32.totalorder %s114, %s115
      %p127 = scmp.eq.s32.totalorder %s42, 1
      %p128 = por %p126, %p127
      %p130 = scmp.ne.s32.totalorder %s115, %s129
      %p131 = scmp.eq.s32.totalorder %s42, 0
      %p132 = por %p130, %p131
      %s134 = sadd.s32 %s133, 1
      %p137 = scmp.eq.s32.totalorder %s36, 1
      %p138 = scmp.ne.s32.totalorder %s133, %s135
      %p139 = scmp.eq.s32.totalorder %s36, 0
      %p140 = por %p138, %p139
      %p141 = scmp.ne.s32.totalorder %s133, %s135
      %p142 = scmp.eq.s32.totalorder %s41, 1
      %p143 = por %p141, %p142
      %p144 = scmp.ne.s32.totalorder %s135, %s136
      %p145 = scmp.eq.s32.totalorder %s41, 0
      %p146 = por %p144, %p145
      %p147 = scmp.ne.s32.totalorder %s135, %s136
      %p148 = scmp.eq.s32.totalorder %s42, 1
      %p149 = por %p147, %p148
      %p151 = scmp.ne.s32.totalorder %s136, %s150
      %p152 = scmp.eq.s32.totalorder %s42, 0
      %p153 = por %p151, %p152
      %s155 = sadd.s32 %s154, 1
      %p158 = scmp.eq.s32.totalorder %s36, 1
      %p159 = scmp.ne.s32.totalorder %s154, %s156
      %p160 = scmp.eq.s32.totalorder %s36, 0
      %p161 = por %p159, %p160
      %p162 = scmp.ne.s32.totalorder %s154, %s156
      %p163 = scmp.eq.s32.totalorder %s41, 1
      %p164 = por %p162, %p163
      %p165 = scmp.ne.s32.totalorder %s156, %s157
      %p166 = scmp.eq.s32.totalorder %s41, 0
      %p167 = por %p165, %p166
      %p168 = scmp.ne.s32.totalorder %s156, %s157
      %p169 = scmp.eq.s32.totalorder %s42, 1
      %p170 = por %p168, %p169
      %p172 = scmp.ne.s32.totalorder %s157, %s171
      %p173 = scmp.eq.s32.totalorder %s42, 0
      %p174 = por %p172, %p173
      %s176 = sadd.s32 %s175, 1
      %p179 = scmp.eq.s32.totalorder %s36, 1
      %p180 = scmp.ne.s32.totalorder %s175, %s177
      %p181 = scmp.eq.s32.totalorder %s36, 0
      %p182 = por %p180, %p181
      %p183 = scmp.ne.s32.totalorder %s175, %s177
      %p184 = scmp.eq.s32.totalorder %s41, 1
      %p185 = por %p183, %p184
      %p186 = scmp.ne.s32.totalorder %s177, %s178
      %p187 = scmp.eq.s32.totalorder %s41, 0
      %p188 = por %p186, %p187
      %p189 = scmp.ne.s32.totalorder %s177, %s178
      %p190 = scmp.eq.s32.totalorder %s42, 1
      %p191 = por %p189, %p190
      %p193 = scmp.ne.s32.totalorder %s178, %s192
      %p194 = scmp.eq.s32.totalorder %s42, 0
      %p195 = por %p193, %p194
      %s197 = sadd.s32 %s196, 1
      %p200 = scmp.eq.s32.totalorder %s36, 1
      %p201 = scmp.ne.s32.totalorder %s196, %s198
      %p202 = scmp.eq.s32.totalorder %s36, 0
      %p203 = por %p201, %p202
      %p204 = scmp.ne.s32.totalorder %s196, %s198
      %p205 = scmp.eq.s32.totalorder %s41, 1
      %p206 = por %p204, %p205
      %p207 = scmp.ne.s32.totalorder %s198, %s199
      %p208 = scmp.eq.s32.totalorder %s41, 0
      %p209 = por %p207, %p208
      %p210 = scmp.ne.s32.totalorder %s198, %s199
      %p211 = scmp.eq.s32.totalorder %s42, 1
      %p212 = por %p210, %p211
      %p214 = scmp.ne.s32.totalorder %s199, %s213
      %p215 = scmp.eq.s32.totalorder %s42, 0
      %p216 = por %p214, %p215
      %s218 = sadd.s32 %s217, 1
      %p221 = scmp.eq.s32.totalorder %s36, 1
      %p222 = scmp.ne.s32.totalorder %s217, %s219
      %p223 = scmp.eq.s32.totalorder %s36, 0
      %p224 = por %p222, %p223
      %p225 = scmp.ne.s32.totalorder %s217, %s219
      %p226 = scmp.eq.s32.totalorder %s41, 1
      %p227 = por %p225, %p226
      %p228 = scmp.ne.s32.totalorder %s219, %s220
      %p229 = scmp.eq.s32.totalorder %s41, 0
      %p230 = por %p228, %p229
      %p231 = scmp.ne.s32.totalorder %s219, %s220
      %p232 = scmp.eq.s32.totalorder %s42, 1
      %p233 = por %p231, %p232
      %p235 = scmp.ne.s32.totalorder %s220, %s234
      %p236 = scmp.eq.s32.totalorder %s42, 0
      %p237 = por %p235, %p236
      %s239 = sadd.s32 %s238, 1
      %p242 = scmp.eq.s32.totalorder %s36, 1
      %p243 = scmp.ne.s32.totalorder %s238, %s240
      %p244 = scmp.eq.s32.totalorder %s36, 0
      %p245 = por %p243, %p244
      %p246 = scmp.ne.s32.totalorder %s238, %s240
      %p247 = scmp.eq.s32.totalorder %s41, 1
      %p248 = por %p246, %p247
      %p249 = scmp.ne.s32.totalorder %s240, %s241
      %p250 = scmp.eq.s32.totalorder %s41, 0
      %p251 = por %p249, %p250
      %p252 = scmp.ne.s32.totalorder %s240, %s241
      %p253 = scmp.eq.s32.totalorder %s42, 1
      %p254 = por %p252, %p253
      %p256 = scmp.ne.s32.totalorder %s241, %s255
      %p257 = scmp.eq.s32.totalorder %s42, 0
      %p258 = por %p256, %p257
      %s260 = sadd.s32 %s259, 1
      %p263 = scmp.eq.s32.totalorder %s36, 1
      %p264 = scmp.ne.s32.totalorder %s259, %s261
      %p265 = scmp.eq.s32.totalorder %s36, 0
      %p266 = por %p264, %p265
      %p267 = scmp.ne.s32.totalorder %s259, %s261
      %p268 = scmp.eq.s32.totalorder %s41, 1
      %p269 = por %p267, %p268
      %p270 = scmp.ne.s32.totalorder %s261, %s262
      %p271 = scmp.eq.s32.totalorder %s41, 0
      %p272 = por %p270, %p271
      %p273 = scmp.ne.s32.totalorder %s261, %s262
      %p274 = scmp.eq.s32.totalorder %s42, 1
      %p275 = por %p273, %p274
      %p277 = scmp.ne.s32.totalorder %s262, %s276
      %p278 = scmp.eq.s32.totalorder %s42, 0
      %p279 = por %p277, %p278
      %s281 = sadd.s32 %s280, 1
      %p284 = scmp.eq.s32.totalorder %s36, 1
      %p285 = scmp.ne.s32.totalorder %s280, %s282
      %p286 = scmp.eq.s32.totalorder %s36, 0
      %p287 = por %p285, %p286
      %p288 = scmp.ne.s32.totalorder %s280, %s282
      %p289 = scmp.eq.s32.totalorder %s41, 1
      %p290 = por %p288, %p289
      %p291 = scmp.ne.s32.totalorder %s282, %s283
      %p292 = scmp.eq.s32.totalorder %s41, 0
      %p293 = por %p291, %p292
      %p294 = scmp.ne.s32.totalorder %s282, %s283
      %p295 = scmp.eq.s32.totalorder %s42, 1
      %p296 = por %p294, %p295
      %p298 = scmp.ne.s32.totalorder %s283, %s297
      %p299 = scmp.eq.s32.totalorder %s42, 0
      %p300 = por %p298, %p299
      %s302 = sadd.s32 %s301, 1
      %p305 = scmp.eq.s32.totalorder %s36, 1
      %p306 = scmp.ne.s32.totalorder %s301, %s303
      %p307 = scmp.eq.s32.totalorder %s36, 0
      %p308 = por %p306, %p307
      %p309 = scmp.ne.s32.totalorder %s301, %s303
      %p310 = scmp.eq.s32.totalorder %s41, 1
      %p311 = por %p309, %p310
      %p312 = scmp.ne.s32.totalorder %s303, %s304
      %p313 = scmp.eq.s32.totalorder %s41, 0
      %p314 = por %p312, %p313
      %p315 = scmp.ne.s32.totalorder %s303, %s304
      %p316 = scmp.eq.s32.totalorder %s42, 1
      %p317 = por %p315, %p316
      %p319 = scmp.ne.s32.totalorder %s304, %s318
      %p320 = scmp.eq.s32.totalorder %s42, 0
      %p321 = por %p319, %p320
      %s323 = sadd.s32 %s322, 1
      %p326 = scmp.eq.s32.totalorder %s36, 1
      %p327 = scmp.ne.s32.totalorder %s322, %s324
      %p328 = scmp.eq.s32.totalorder %s36, 0
      %p329 = por %p327, %p328
      %p330 = scmp.ne.s32.totalorder %s322, %s324
      %p331 = scmp.eq.s32.totalorder %s41, 1
      %p332 = por %p330, %p331
      %p333 = scmp.ne.s32.totalorder %s324, %s325
      %p334 = scmp.eq.s32.totalorder %s41, 0
      %p335 = por %p333, %p334
      %p336 = scmp.ne.s32.totalorder %s324, %s325
      %p337 = scmp.eq.s32.totalorder %s42, 1
      %p338 = por %p336, %p337
      %p340 = scmp.ne.s32.totalorder %s325, %s339
      %p341 = scmp.eq.s32.totalorder %s42, 0
      %p342 = por %p340, %p341
      %s344 = sadd.s32 %s343, 1
      %p347 = scmp.eq.s32.totalorder %s36, 1
      %p348 = scmp.ne.s32.totalorder %s343, %s345
      %p349 = scmp.eq.s32.totalorder %s36, 0
      %p350 = por %p348, %p349
      %p351 = scmp.ne.s32.totalorder %s343, %s345
      %p352 = scmp.eq.s32.totalorder %s41, 1
      %p353 = por %p351, %p352
      %p354 = scmp.ne.s32.totalorder %s345, %s346
      %p355 = scmp.eq.s32.totalorder %s41, 0
      %p356 = por %p354, %p355
      %p357 = scmp.ne.s32.totalorder %s345, %s346
      %p358 = scmp.eq.s32.totalorder %s42, 1
      %p359 = por %p357, %p358
      %p361 = scmp.ne.s32.totalorder %s346, %s360
      %p362 = scmp.eq.s32.totalorder %s42, 0
      %p363 = por %p361, %p362
      %s365 = sadd.s32 %s364, 1
      %p368 = scmp.eq.s32.totalorder %s36, 1
      %p369 = scmp.ne.s32.totalorder %s364, %s366
      %p370 = scmp.eq.s32.totalorder %s36, 0
      %p371 = por %p369, %p370
      %p372 = scmp.ne.s32.totalorder %s364, %s366
      %p373 = scmp.eq.s32.totalorder %s41, 1
      %p374 = por %p372, %p373
      %p375 = scmp.ne.s32.totalorder %s366, %s367
      %p376 = scmp.eq.s32.totalorder %s41, 0
      %p377 = por %p375, %p376
      %p378 = scmp.ne.s32.totalorder %s366, %s367
      %p379 = scmp.eq.s32.totalorder %s42, 1
      %p380 = por %p378, %p379
      %p382 = scmp.ne.s32.totalorder %s367, %s381
      %p383 = scmp.eq.s32.totalorder %s42, 0
      %p384 = por %p382, %p383
      %s386 = sadd.s32 %s385, 1
      %p389 = scmp.eq.s32.totalorder %s36, 1
      %p390 = scmp.ne.s32.totalorder %s385, %s387
      %p391 = scmp.eq.s32.totalorder %s36, 0
      %p392 = por %p390, %p391
      %p393 = scmp.ne.s32.totalorder %s385, %s387
      %p394 = scmp.eq.s32.totalorder %s41, 1
      %p395 = por %p393, %p394
      %p396 = scmp.ne.s32.totalorder %s387, %s388
      %p397 = scmp.eq.s32.totalorder %s41, 0
      %p398 = por %p396, %p397
      %p399 = scmp.ne.s32.totalorder %s387, %s388
      %p400 = scmp.eq.s32.totalorder %s42, 1
      %p401 = por %p399, %p400
      %p403 = scmp.ne.s32.totalorder %s388, %s402
      %p404 = scmp.eq.s32.totalorder %s42, 0
      %p405 = por %p403, %p404
      %s406 = ssub.s32 %s36, %s43
      %p407 = scmp.eq.s32.totalorder %s406, 0
      %s409 = sadd.s32 %s408, 1
      %s410 = scalar_select %p407, %s408, %s409
      %p413 = pneg %p407
      %p414 = scmp.eq.s32.totalorder %s36, 1
      %p415 = por %p413, %p414
      %p416 = scmp.ne.s32.totalorder %s408, %s411
      %p417 = scmp.eq.s32.totalorder %s36, 0
      %p418 = por %p416, %p417
      %p419 = scmp.ne.s32.totalorder %s408, %s411
      %p420 = scmp.eq.s32.totalorder %s41, 1
      %p421 = por %p419, %p420
      %p422 = scmp.ne.s32.totalorder %s411, %s412
      %p423 = scmp.eq.s32.totalorder %s41, 0
      %p424 = por %p422, %p423
      %p425 = scmp.ne.s32.totalorder %s411, %s412
      %p426 = scmp.eq.s32.totalorder %s42, 1
      %p427 = por %p425, %p426
      %p429 = scmp.ne.s32.totalorder %s412, %s428
      %p430 = scmp.eq.s32.totalorder %s42, 0
      %p431 = por %p429, %p430
      %s432 = ssub.s32 %s36, %s43
      %p433 = scmp.eq.s32.totalorder %s432, 0
      %s435 = sadd.s32 %s434, 1
      %s436 = scalar_select %p433, %s434, %s435
      %p439 = pneg %p433
      %p440 = scmp.eq.s32.totalorder %s36, 1
      %p441 = por %p439, %p440
      %p442 = scmp.ne.s32.totalorder %s434, %s437
      %p443 = scmp.eq.s32.totalorder %s36, 0
      %p444 = por %p442, %p443
      %p445 = scmp.ne.s32.totalorder %s434, %s437
      %p446 = scmp.eq.s32.totalorder %s41, 1
      %p447 = por %p445, %p446
      %p448 = scmp.ne.s32.totalorder %s437, %s438
      %p449 = scmp.eq.s32.totalorder %s41, 0
      %p450 = por %p448, %p449
      %p451 = scmp.ne.s32.totalorder %s437, %s438
      %p452 = scmp.eq.s32.totalorder %s42, 1
      %p453 = por %p451, %p452
      %p455 = scmp.ne.s32.totalorder %s438, %s454
      %p456 = scmp.eq.s32.totalorder %s42, 0
      %p457 = por %p455, %p456
      %p458 = scmp.le.s32.totalorder 1, %s36
      %p459 = scmp.lt.s32.totalorder %s36, 3
      %p460 = pnand %p458, %p459
      %p461 = pneg %p460
      // Predicated region
      $region9: #{tpu_custom_call.1} parent=5 // pred_check
        _
      $region10: #{tpu_custom_call.1} parent=5 // pred_check_branch
        %463 = sbr.rel (%p460) target = $region12
      $region11: #{tpu_custom_call.1} parent=5 // pred_region
        %s464 = ssub.s32 %s36, 1
        // Predicated region
        $region13: #{tpu_custom_call.1} parent=11 // pred_check
          %p465 = pneg %p83
        $region14: #{tpu_custom_call.1} parent=11 // pred_check_branch
          %467 = sbr.rel (%p465) target = $region16
        $region15: #{tpu_custom_call.1} parent=11 // pred_region
          _
        $region16: #{tpu_custom_call.1} parent=11 // pred_fallthru
          _
        // Predicated region
        $region17: #{tpu_custom_call.1} parent=11 // pred_check
          %p468 = pneg %p104
        $region18: #{tpu_custom_call.1} parent=11 // pred_check_branch
          %470 = sbr.rel (%p468) target = $region20
        $region19: #{tpu_custom_call.1} parent=11 // pred_region
          %s472 = ssub.s32 16, 16
          %473 = vsyncadd [#allocation3], %s472
          %s475 = sshll.u32 [#allocation2], 4
          %s476 = int_to_ptr.vmem [resolvable:$true] %s475
          %478 = dma.hbm_to_vmem [thread:$0]  %s2, 16, %s476, [#allocation3]
        $region20: #{tpu_custom_call.1} parent=11 // pred_fallthru
          _
        // Predicated region
        $region21: #{tpu_custom_call.1} parent=11 // pred_check
          %p479 = pneg %p125
        $region22: #{tpu_custom_call.1} parent=11 // pred_check_branch
          %481 = sbr.rel (%p479) target = $region24
        $region23: #{tpu_custom_call.1} parent=11 // pred_region
          _
        $region24: #{tpu_custom_call.1} parent=11 // pred_fallthru
          _
        // Predicated region
        $region25: #{tpu_custom_call.1} parent=11 // pred_check
          %p482 = pneg %p146
        $region26: #{tpu_custom_call.1} parent=11 // pred_check_branch
          %484 = sbr.rel (%p482) target = $region28
        $region27: #{tpu_custom_call.1} parent=11 // pred_region
          _
        $region28: #{tpu_custom_call.1} parent=11 // pred_fallthru
          _
        // Predicated region
        $region29: #{tpu_custom_call.1} parent=11 // pred_check
          %p485 = pneg %p167
        $region30: #{tpu_custom_call.1} parent=11 // pred_check_branch
          %487 = sbr.rel (%p485) target = $region32
        $region31: #{tpu_custom_call.1} parent=11 // pred_region
          %s489 = ssub.s32 256, 256
          %490 = vsyncadd [#allocation6], %s489
          %s491 = sshll.u32 [#allocation5], 4
          %s492 = int_to_ptr.vmem [resolvable:$true] %s491
          %497 = dma.hbm_to_vmem [thread:$0]  %s5, 256, %s492, [#allocation6], 64, 64, 4
        $region32: #{tpu_custom_call.1} parent=11 // pred_fallthru
          _
        // Predicated region
        $region33: #{tpu_custom_call.1} parent=11 // pred_check
          %p498 = pneg %p188
        $region34: #{tpu_custom_call.1} parent=11 // pred_check_branch
          %500 = sbr.rel (%p498) target = $region36
        $region35: #{tpu_custom_call.1} parent=11 // pred_region
          %s502 = ssub.s32 16, 16
          %503 = vsyncadd [#allocation6], %s502
          %s505 = sshll.u32 [#allocation7], 4
          %s506 = int_to_ptr.vmem [resolvable:$true] %s505
          %508 = dma.hbm_to_vmem [thread:$0]  %s6, 16, %s506, [#allocation6]
        $region36: #{tpu_custom_call.1} parent=11 // pred_fallthru
          _
        // Predicated region
        $region37: #{tpu_custom_call.1} parent=11 // pred_check
          %p509 = pneg %p209
        $region38: #{tpu_custom_call.1} parent=11 // pred_check_branch
          %511 = sbr.rel (%p509) target = $region40
        $region39: #{tpu_custom_call.1} parent=11 // pred_region
          %s513 = ssub.s32 16, 16
          %514 = vsyncadd [#allocation9], %s513
          %s516 = sshll.u32 [#allocation8], 4
          %s517 = int_to_ptr.vmem [resolvable:$true] %s516
          %519 = dma.hbm_to_vmem [thread:$0]  %s7, 16, %s517, [#allocation9]
        $region40: #{tpu_custom_call.1} parent=11 // pred_fallthru
          _
        // Predicated region
        $region41: #{tpu_custom_call.1} parent=11 // pred_check
          %p520 = pneg %p230
        $region42: #{tpu_custom_call.1} parent=11 // pred_check_branch
          %522 = sbr.rel (%p520) target = $region44
        $region43: #{tpu_custom_call.1} parent=11 // pred_region
          %s524 = ssub.s32 16, 16
          %525 = vsyncadd [#allocation9], %s524
          %s527 = sshll.u32 [#allocation10], 4
          %s528 = int_to_ptr.vmem [resolvable:$true] %s527
          %530 = dma.hbm_to_vmem [thread:$0]  %s8, 16, %s528, [#allocation9]
        $region44: #{tpu_custom_call.1} parent=11 // pred_fallthru
          _
        // Predicated region
        $region45: #{tpu_custom_call.1} parent=11 // pred_check
          %p531 = pneg %p251
        $region46: #{tpu_custom_call.1} parent=11 // pred_check_branch
          %533 = sbr.rel (%p531) target = $region48
        $region47: #{tpu_custom_call.1} parent=11 // pred_region
          _
        $region48: #{tpu_custom_call.1} parent=11 // pred_fallthru
          _
        // Predicated region
        $region49: #{tpu_custom_call.1} parent=11 // pred_check
          %p534 = pneg %p272
        $region50: #{tpu_custom_call.1} parent=11 // pred_check_branch
          %536 = sbr.rel (%p534) target = $region52
        $region51: #{tpu_custom_call.1} parent=11 // pred_region
          %s538 = ssub.s32 16, 16
          %539 = vsyncadd [#allocation12], %s538
          %s541 = sshll.u32 [#allocation11], 4
          %s542 = int_to_ptr.vmem [resolvable:$true] %s541
          %544 = dma.hbm_to_vmem [thread:$0]  %s10, 16, %s542, [#allocation12]
        $region52: #{tpu_custom_call.1} parent=11 // pred_fallthru
          _
        // Predicated region
        $region53: #{tpu_custom_call.1} parent=11 // pred_check
          %p545 = pneg %p293
        $region54: #{tpu_custom_call.1} parent=11 // pred_check_branch
          %547 = sbr.rel (%p545) target = $region56
        $region55: #{tpu_custom_call.1} parent=11 // pred_region
          %s549 = ssub.s32 16, 16
          %550 = vsyncadd [#allocation12], %s549
          %s552 = sshll.u32 [#allocation13], 4
          %s553 = int_to_ptr.vmem [resolvable:$true] %s552
          %555 = dma.hbm_to_vmem [thread:$0]  %s11, 16, %s553, [#allocation12]
        $region56: #{tpu_custom_call.1} parent=11 // pred_fallthru
          _
        // Predicated region
        $region57: #{tpu_custom_call.1} parent=11 // pred_check
          %p556 = pneg %p314
        $region58: #{tpu_custom_call.1} parent=11 // pred_check_branch
          %558 = sbr.rel (%p556) target = $region60
        $region59: #{tpu_custom_call.1} parent=11 // pred_region
          %s560 = ssub.s32 16, 16
          %561 = vsyncadd [#allocation15], %s560
          %s563 = sshll.u32 [#allocation14], 4
          %s564 = int_to_ptr.vmem [resolvable:$true] %s563
          %566 = dma.hbm_to_vmem [thread:$0]  %s12, 16, %s564, [#allocation15]
        $region60: #{tpu_custom_call.1} parent=11 // pred_fallthru
          _
        // Predicated region
        $region61: #{tpu_custom_call.1} parent=11 // pred_check
          %p567 = pneg %p335
        $region62: #{tpu_custom_call.1} parent=11 // pred_check_branch
          %569 = sbr.rel (%p567) target = $region64
        $region63: #{tpu_custom_call.1} parent=11 // pred_region
          _
        $region64: #{tpu_custom_call.1} parent=11 // pred_fallthru
          _
        // Predicated region
        $region65: #{tpu_custom_call.1} parent=11 // pred_check
          %p570 = pneg %p356
        $region66: #{tpu_custom_call.1} parent=11 // pred_check_branch
          %572 = sbr.rel (%p570) target = $region68
        $region67: #{tpu_custom_call.1} parent=11 // pred_region
          _
        $region68: #{tpu_custom_call.1} parent=11 // pred_fallthru
          _
        // Predicated region
        $region69: #{tpu_custom_call.1} parent=11 // pred_check
          %p573 = pneg %p377
        $region70: #{tpu_custom_call.1} parent=11 // pred_check_branch
          %575 = sbr.rel (%p573) target = $region72
        $region71: #{tpu_custom_call.1} parent=11 // pred_region
          _
        $region72: #{tpu_custom_call.1} parent=11 // pred_fallthru
          _
        // Predicated region
        $region73: #{tpu_custom_call.1} parent=11 // pred_check
          %p576 = pneg %p398
        $region74: #{tpu_custom_call.1} parent=11 // pred_check_branch
          %578 = sbr.rel (%p576) target = $region76
        $region75: #{tpu_custom_call.1} parent=11 // pred_region
          _
        $region76: #{tpu_custom_call.1} parent=11 // pred_fallthru
          _
      $region12: #{tpu_custom_call.1} parent=5 // pred_fallthru
        _
      %p579 = scmp.lt.s32.totalorder %s36, 2
      // Predicated region
      $region77: #{tpu_custom_call.1} parent=5 // pred_check
        %p580 = pneg %p579
      $region78: #{tpu_custom_call.1} parent=5 // pred_check_branch
        %582 = sbr.rel (%p580) target = $region80
      $region79: #{tpu_custom_call.1} parent=5 // pred_region
        // Predicated region
        $region81: #{tpu_custom_call.1} parent=79 // pred_check
          %p583 = pneg %p56
        $region82: #{tpu_custom_call.1} parent=79 // pred_check_branch
          %585 = sbr.rel (%p583) target = $region84
        $region83: #{tpu_custom_call.1} parent=79 // pred_region
          %p586 = scmp.lt.s32.totalorder %s36, 1
          %s587 = scalar_select %p586, %s36, 1
          %s588 = smul.addr %s587, 8
          %s589 = scalar_lea.vmem %s0, %s588
        $region84: #{tpu_custom_call.1} parent=79 // pred_fallthru
          _
      $region80: #{tpu_custom_call.1} parent=5 // pred_fallthru
        _
      %p590 = scmp.le.s32.totalorder 1, %s36
      %p591 = scmp.lt.s32.totalorder %s36, 3
      %p592 = pnand %p590, %p591
      %p593 = pneg %p592
      // Predicated region
      $region85: #{tpu_custom_call.1} parent=5 // pred_check
        _
      $region86: #{tpu_custom_call.1} parent=5 // pred_check_branch
        %595 = sbr.rel (%p592) target = $region88
      $region87: #{tpu_custom_call.1} parent=5 // pred_region
        %s596 = ssub.s32 %s36, 1
        // Predicated region
        $region89: #{tpu_custom_call.1} parent=87 // pred_check
          %p597 = pneg %p104
        $region90: #{tpu_custom_call.1} parent=87 // pred_check_branch
          %599 = sbr.rel (%p597) target = $region92
        $region91: #{tpu_custom_call.1} parent=87 // pred_region
          %600 = dma.done [#allocation3], 16
        $region92: #{tpu_custom_call.1} parent=87 // pred_fallthru
          _
        // Predicated region
        $region93: #{tpu_custom_call.1} parent=87 // pred_check
          %p601 = pneg %p167
        $region94: #{tpu_custom_call.1} parent=87 // pred_check_branch
          %603 = sbr.rel (%p601) target = $region96
        $region95: #{tpu_custom_call.1} parent=87 // pred_region
          %604 = dma.done [#allocation6], 256
        $region96: #{tpu_custom_call.1} parent=87 // pred_fallthru
          _
        // Predicated region
        $region97: #{tpu_custom_call.1} parent=87 // pred_check
          %p605 = pneg %p188
        $region98: #{tpu_custom_call.1} parent=87 // pred_check_branch
          %607 = sbr.rel (%p605) target = $region100
        $region99: #{tpu_custom_call.1} parent=87 // pred_region
          %608 = dma.done [#allocation6], 16
        $region100: #{tpu_custom_call.1} parent=87 // pred_fallthru
          _
        // Predicated region
        $region101: #{tpu_custom_call.1} parent=87 // pred_check
          %p609 = pneg %p209
        $region102: #{tpu_custom_call.1} parent=87 // pred_check_branch
          %611 = sbr.rel (%p609) target = $region104
        $region103: #{tpu_custom_call.1} parent=87 // pred_region
          %612 = dma.done [#allocation9], 16
        $region104: #{tpu_custom_call.1} parent=87 // pred_fallthru
          _
        // Predicated region
        $region105: #{tpu_custom_call.1} parent=87 // pred_check
          %p613 = pneg %p230
        $region106: #{tpu_custom_call.1} parent=87 // pred_check_branch
          %615 = sbr.rel (%p613) target = $region108
        $region107: #{tpu_custom_call.1} parent=87 // pred_region
          %616 = dma.done [#allocation9], 16
        $region108: #{tpu_custom_call.1} parent=87 // pred_fallthru
          _
        // Predicated region
        $region109: #{tpu_custom_call.1} parent=87 // pred_check
          %p617 = pneg %p272
        $region110: #{tpu_custom_call.1} parent=87 // pred_check_branch
          %619 = sbr.rel (%p617) target = $region112
        $region111: #{tpu_custom_call.1} parent=87 // pred_region
          %620 = dma.done [#allocation12], 16
        $region112: #{tpu_custom_call.1} parent=87 // pred_fallthru
          _
        // Predicated region
        $region113: #{tpu_custom_call.1} parent=87 // pred_check
          %p621 = pneg %p293
        $region114: #{tpu_custom_call.1} parent=87 // pred_check_branch
          %623 = sbr.rel (%p621) target = $region116
        $region115: #{tpu_custom_call.1} parent=87 // pred_region
          %624 = dma.done [#allocation12], 16
        $region116: #{tpu_custom_call.1} parent=87 // pred_fallthru
          _
        // Predicated region
        $region117: #{tpu_custom_call.1} parent=87 // pred_check
          %p625 = pneg %p314
        $region118: #{tpu_custom_call.1} parent=87 // pred_check_branch
          %627 = sbr.rel (%p625) target = $region120
        $region119: #{tpu_custom_call.1} parent=87 // pred_region
          %628 = dma.done [#allocation15], 16
        $region120: #{tpu_custom_call.1} parent=87 // pred_fallthru
          _
        %p629 = scmp.lt.s32.totalorder %s41, 1
        %s630 = scalar_select %p629, %s41, 1
        %s631 = smul.addr %s630, 8
        %s632 = scalar_lea.vmem %s0, %s631
        %p633 = pneg %p62
        %p634 = pneg %p59
        %p635 = pneg %p83
        %p636 = pneg %p80
        %p637 = pneg %p104
        %p638 = pneg %p101
        %p639 = pneg %p125
        %p640 = pneg %p122
        %p641 = pneg %p146
        %p642 = pneg %p143
        %p643 = pneg %p167
        %p644 = pneg %p164
        %p645 = pneg %p188
        %p646 = pneg %p185
        %p647 = pneg %p209
        %p648 = pneg %p206
        %p649 = pneg %p230
        %p650 = pneg %p227
        %p651 = pneg %p251
        %p652 = pneg %p248
        %p653 = pneg %p272
        %p654 = pneg %p269
        %p655 = pneg %p293
        %p656 = pneg %p290
        %p657 = pneg %p314
        %p658 = pneg %p311
        %p659 = pneg %p335
        %p660 = pneg %p332
        %p661 = pneg %p356
        %p662 = pneg %p353
        %p663 = pneg %p377
        %p664 = pneg %p374
        %p665 = pneg %p398
        %p666 = pneg %p395
        %p667 = pneg %p424
        %p668 = pneg %p421
        %s669 = sand.u32 %s411, 1
        %s670 = scalar_lea.sflag [#allocation4], %s669
        %s671 = sand.u32 %s411, 1
        %s672 = smul.addr %s671, 8
        %s673 = scalar_lea.vmem [#allocation16], %s672
        %p674 = pneg %p450
        %p675 = pneg %p447
        %s676 = sand.u32 %s437, 1
        %s677 = scalar_lea.sflag [#allocation18], %s676
        %s678 = sand.u32 %s437, 1
        %s679 = smul.addr %s678, 8
        %s680 = scalar_lea.vmem [#allocation17], %s679
        %p681 = scmp.lt.s32.totalorder %s41, 1
        %s682 = scalar_select %p681, %s41, 1
        %s683 = smul.addr %s682, 8
        %s684 = scalar_lea.vmem %s0, %s683
        %v686 = vld [vmem:[%s684] sm:$0xff]
        %vm687 = vcmask 261120
        %v688 = vsel %vm687, %v686, 0.0
        %689 = vadd.xlane.f32.xlu0 %v688
        %v690 = vpop.xlane.xlu0 %689
        %v691 = vrcp.pop 32.0
        %v692 = vmul.f32 %v690, %v691
        %v693 = vsub.f32 %v686, %v692
        %v694 = vmul.f32 %v693, %v693
        %v695 = vsel %vm687, %v694, 0.0
        %696 = vadd.xlane.f32.xlu0 %v695
        %v697 = vpop.xlane.xlu0 %696
        %v698 = vmul.f32 %v697, %v691
        %v699 = vadd.f32 %v698, 1e-06
        %v700 = vrsqrt.pop %v699
        %v701 = vmul.f32 %v693, %v700
        %v702 = vld [vmem:[%s1] sm:$0x1]
        %v704 = vlaneseq
        %v705 = vshrl.u32 %v704, 7
        %v706 = vsub.s32 0, %v705
        %v707 = vrot.slane %v702, %v706
        %v709 = vmul.f32 %v701, %v707
        %v710 = vld [vmem:[#allocation2] sm:$0x1]
        %v712 = vlaneseq
        %v713 = vshrl.u32 %v712, 7
        %v714 = vsub.s32 0, %v713
        %v715 = vrot.slane %v710, %v714
        %v717 = vadd.f32 %v709, %v715
        %v718 = vpack.c.bf16 %v717, %v717
        %v719 = vld [vmem:[%s3] sm:$0xf]
        %v720 = vld [vmem:[%s3 + $0x4] sm:$0xf]
        %v721 = vld [vmem:[%s3 + $0x8] sm:$0xf]
        %v722 = vld [vmem:[%s3 + $0xc] sm:$0xf]
        %v723 = vld [vmem:[#allocation7] sm:$0x1]
        %v725 = vlaneseq
        %v726 = vshrl.u32 %v725, 7
        %v727 = vsub.s32 0, %v726
        %v728 = vrot.slane %v723, %v727
        %v734 = vunpack.c.l.b16 %v719
        %v735 = vunpack.c.l.b16 %v720
        %v736 = vunpack.c.l.b16 %v721
        %v737 = vunpack.c.l.b16 %v722
        %v738 = vpack.c.b16 %v735, %v734
        %v739 = vpack.c.b16 %v737, %v736
        %v743 = vsel %vm687, %v718, 0
        %745 = vmatprep.subr.bf16.mxu0 0
        %746 = vmatpush1.bf16.msra.mxu0 %v738
        %747 = vmatprep.subr.bf16.mxu0 0
        %748 = vmatpush1.bf16.msra.mxu0 %v739
        %749 = vmatprep.subr.bf16.mxu0 0
        %750 = vmatpush1.bf16.msra.mxu0 0
        %751 = vmatprep.subr.bf16.mxu0 0
        %752 = vmatpush1.bf16.msra.mxu0 0
        %753 = vmatprep.subr.bf16.mxu0 0
        %754 = vmatpush1.bf16.msra.mxu0 0
        %755 = vmatprep.subr.bf16.mxu0 0
        %756 = vmatpush1.bf16.msra.mxu0 0
        %757 = vmatprep.subr.bf16.mxu0 0
        %758 = vmatpush1.bf16.msra.mxu0 0
        %759 = vmatprep.subr.bf16.mxu0 0
        %760 = vmatpush1.bf16.msra.mxu0 0
        %761 = vmatprep.subr.bf16.mxu0 0
        %762 = vmatpush1.bf16.msra.mxu0 0
        %763 = vmatprep.subr.bf16.mxu0 0
        %764 = vmatpush1.bf16.msra.mxu0 0
        %765 = vmatprep.subr.bf16.mxu0 0
        %766 = vmatpush1.bf16.msra.mxu0 0
        %767 = vmatprep.subr.bf16.mxu0 0
        %768 = vmatpush1.bf16.msra.mxu0 0
        %769 = vmatprep.subr.bf16.mxu0 0
        %770 = vmatpush1.bf16.msra.mxu0 0
        %771 = vmatprep.subr.bf16.mxu0 0
        %772 = vmatpush1.bf16.msra.mxu0 0
        %773 = vmatprep.subr.bf16.mxu0 0
        %774 = vmatpush1.bf16.msra.mxu0 0
        %775 = vmatprep.subr.bf16.mxu0 0
        %776 = vmatpush1.bf16.msra.mxu0 0
        %777 = vmatprep.mubr.bf16.mxu0 0
        %778 = vmatmul.mubr.bf16.gmra.mrb[0].mxu0 %v743
        %v779 = vpop.f32.mrb[0].mxu0
        %v780 = vadd.f32 %v728, %v779
        %v781 = vpop.f32.mrb[0].mxu0
        %v782 = vpop.f32.mrb[0].mxu0
        %v783 = vpop.f32.mrb[0].mxu0
        %784 = vdwg.mxu0
        %v785 = vld [vmem:[%s4] sm:$0xf]
        %v786 = vld [vmem:[%s4 + $0x4] sm:$0xf]
        %v787 = vld [vmem:[%s4 + $0x8] sm:$0xf]
        %v788 = vld [vmem:[%s4 + $0xc] sm:$0xf]
        %v789 = vld [vmem:[#allocation8] sm:$0x1]
        %v791 = vlaneseq
        %v792 = vshrl.u32 %v791, 7
        %v793 = vsub.s32 0, %v792
        %v794 = vrot.slane %v789, %v793
        %v800 = vunpack.c.l.b16 %v785
        %v801 = vunpack.c.l.b16 %v786
        %v802 = vunpack.c.l.b16 %v787
        %v803 = vunpack.c.l.b16 %v788
        %v804 = vpack.c.b16 %v801, %v800
        %v805 = vpack.c.b16 %v803, %v802
        %808 = vmatprep.subr.bf16.mxu0 0
        %809 = vmatpush1.bf16.msra.mxu0 %v804
        %810 = vmatprep.subr.bf16.mxu0 0
        %811 = vmatpush1.bf16.msra.mxu0 %v805
        %812 = vmatprep.subr.bf16.mxu0 0
        %813 = vmatpush1.bf16.msra.mxu0 0
        %814 = vmatprep.subr.bf16.mxu0 0
        %815 = vmatpush1.bf16.msra.mxu0 0
        %816 = vmatprep.subr.bf16.mxu0 0
        %817 = vmatpush1.bf16.msra.mxu0 0
        %818 = vmatprep.subr.bf16.mxu0 0
        %819 = vmatpush1.bf16.msra.mxu0 0
        %820 = vmatprep.subr.bf16.mxu0 0
        %821 = vmatpush1.bf16.msra.mxu0 0
        %822 = vmatprep.subr.bf16.mxu0 0
        %823 = vmatpush1.bf16.msra.mxu0 0
        %824 = vmatprep.subr.bf16.mxu0 0
        %825 = vmatpush1.bf16.msra.mxu0 0
        %826 = vmatprep.subr.bf16.mxu0 0
        %827 = vmatpush1.bf16.msra.mxu0 0
        %828 = vmatprep.subr.bf16.mxu0 0
        %829 = vmatpush1.bf16.msra.mxu0 0
        %830 = vmatprep.subr.bf16.mxu0 0
        %831 = vmatpush1.bf16.msra.mxu0 0
        %832 = vmatprep.subr.bf16.mxu0 0
        %833 = vmatpush1.bf16.msra.mxu0 0
        %834 = vmatprep.subr.bf16.mxu0 0
        %835 = vmatpush1.bf16.msra.mxu0 0
        %836 = vmatprep.subr.bf16.mxu0 0
        %837 = vmatpush1.bf16.msra.mxu0 0
        %838 = vmatprep.subr.bf16.mxu0 0
        %839 = vmatpush1.bf16.msra.mxu0 0
        %840 = vmatprep.mubr.bf16.mxu0 0
        %841 = vmatmul.mubr.bf16.gmra.mrb[0].mxu0 %v743
        %v842 = vpop.f32.mrb[0].mxu0
        %v843 = vadd.f32 %v794, %v842
        %v844 = vpop.f32.mrb[0].mxu0
        %v845 = vpop.f32.mrb[0].mxu0
        %v846 = vpop.f32.mrb[0].mxu0
        %847 = vdwg.mxu0
        %v848 = vld [vmem:[#allocation5] sm:$0xf]
        %v849 = vld [vmem:[#allocation5 + $0x4] sm:$0xf]
        %v850 = vld [vmem:[#allocation5 + $0x8] sm:$0xf]
        %v851 = vld [vmem:[#allocation5 + $0xc] sm:$0xf]
        %v852 = vld [vmem:[#allocation10] sm:$0x1]
        %v854 = vlaneseq
        %v855 = vshrl.u32 %v854, 7
        %v856 = vsub.s32 0, %v855
        %v857 = vrot.slane %v852, %v856
        %v863 = vunpack.c.l.b16 %v848
        %v864 = vunpack.c.l.b16 %v849
        %v865 = vunpack.c.l.b16 %v850
        %v866 = vunpack.c.l.b16 %v851
        %v867 = vpack.c.b16 %v864, %v863
        %v868 = vpack.c.b16 %v866, %v865
        %871 = vmatprep.subr.bf16.mxu0 0
        %872 = vmatpush1.bf16.msra.mxu0 %v867
        %873 = vmatprep.subr.bf16.mxu0 0
        %874 = vmatpush1.bf16.msra.mxu0 %v868
        %875 = vmatprep.subr.bf16.mxu0 0
        %876 = vmatpush1.bf16.msra.mxu0 0
        %877 = vmatprep.subr.bf16.mxu0 0
        %878 = vmatpush1.bf16.msra.mxu0 0
        %879 = vmatprep.subr.bf16.mxu0 0
        %880 = vmatpush1.bf16.msra.mxu0 0
        %881 = vmatprep.subr.bf16.mxu0 0
        %882 = vmatpush1.bf16.msra.mxu0 0
        %883 = vmatprep.subr.bf16.mxu0 0
        %884 = vmatpush1.bf16.msra.mxu0 0
        %885 = vmatprep.subr.bf16.mxu0 0
        %886 = vmatpush1.bf16.msra.mxu0 0
        %887 = vmatprep.subr.bf16.mxu0 0
        %888 = vmatpush1.bf16.msra.mxu0 0
        %889 = vmatprep.subr.bf16.mxu0 0
        %890 = vmatpush1.bf16.msra.mxu0 0
        %891 = vmatprep.subr.bf16.mxu0 0
        %892 = vmatpush1.bf16.msra.mxu0 0
        %893 = vmatprep.subr.bf16.mxu0 0
        %894 = vmatpush1.bf16.msra.mxu0 0
        %895 = vmatprep.subr.bf16.mxu0 0
        %896 = vmatpush1.bf16.msra.mxu0 0
        %897 = vmatprep.subr.bf16.mxu0 0
        %898 = vmatpush1.bf16.msra.mxu0 0
        %899 = vmatprep.subr.bf16.mxu0 0
        %900 = vmatpush1.bf16.msra.mxu0 0
        %901 = vmatprep.subr.bf16.mxu0 0
        %902 = vmatpush1.bf16.msra.mxu0 0
        %903 = vmatprep.mubr.bf16.mxu0 0
        %904 = vmatmul.mubr.bf16.gmra.mrb[0].mxu0 %v743
        %v905 = vpop.f32.mrb[0].mxu0
        %v906 = vadd.f32 %v857, %v905
        %v907 = vpop.f32.mrb[0].mxu0
        %v908 = vpop.f32.mrb[0].mxu0
        %v909 = vpop.f32.mrb[0].mxu0
        %910 = vdwg.mxu0
        %v911 = vld [vmem:[%s9] sm:$0xf]
        %v912 = vld [vmem:[%s9 + $0x4] sm:$0xf]
        %v913 = vld [vmem:[%s9 + $0x8] sm:$0xf]
        %v914 = vld [vmem:[%s9 + $0xc] sm:$0xf]
        %v915 = vpack.c.bf16 %v780, %v780
        %v916 = vpack.c.bf16 %v843, %v843
        %v917 = vpack.c.bf16 %v906, %v906
        %vm918 = vcmask 64512
        %v920 = vsel %vm918, %v915, 0
        %v923 = vsel %vm918, %v916, 0
        %925 = vmatprep.subr.bf16.mxu0 0
        %926 = vmatpush1.bf16.xpose.msra.mxu0 %v923
        %927 = vmatprep.subr.bf16.mxu0 0
        %928 = vmatpush1.bf16.xpose.msra.mxu0 0
        %929 = vmatprep.subr.bf16.mxu0 0
        %930 = vmatpush1.bf16.xpose.msra.mxu0 0
        %931 = vmatprep.subr.bf16.mxu0 0
        %932 = vmatpush1.bf16.xpose.msra.mxu0 0
        %933 = vmatprep.subr.bf16.mxu0 0
        %934 = vmatpush1.bf16.xpose.msra.mxu0 0
        %935 = vmatprep.subr.bf16.mxu0 0
        %936 = vmatpush1.bf16.xpose.msra.mxu0 0
        %937 = vmatprep.subr.bf16.mxu0 0
        %938 = vmatpush1.bf16.xpose.msra.mxu0 0
        %939 = vmatprep.subr.bf16.mxu0 0
        %940 = vmatpush1.bf16.xpose.msra.mxu0 0
        %941 = vmatprep.subr.bf16.mxu0 0
        %942 = vmatpush1.bf16.xpose.msra.mxu0 0
        %943 = vmatprep.subr.bf16.mxu0 0
        %944 = vmatpush1.bf16.xpose.msra.mxu0 0
        %945 = vmatprep.subr.bf16.mxu0 0
        %946 = vmatpush1.bf16.xpose.msra.mxu0 0
        %947 = vmatprep.subr.bf16.mxu0 0
        %948 = vmatpush1.bf16.xpose.msra.mxu0 0
        %949 = vmatprep.subr.bf16.mxu0 0
        %950 = vmatpush1.bf16.xpose.msra.mxu0 0
        %951 = vmatprep.subr.bf16.mxu0 0
        %952 = vmatpush1.bf16.xpose.msra.mxu0 0
        %953 = vmatprep.subr.bf16.mxu0 0
        %954 = vmatpush1.bf16.xpose.msra.mxu0 0
        %955 = vmatprep.subr.bf16.mxu0 0
        %956 = vmatpush1.bf16.xpose.msra.mxu0 0
        %957 = vmatprep.mubr.bf16.mxu0 0
        %958 = vmatmul.mubr.bf16.gmra.mrb[0].mxu0 %v920
        %v959 = vpop.f32.mrb[0].mxu0
        %v960 = vadd.f32 0.0, %v959
        %v961 = vpop.f32.mrb[0].mxu0
        %v962 = vpop.f32.mrb[0].mxu0
        %v963 = vpop.f32.mrb[0].mxu0
        %964 = vdwg.mxu0
        %v965 = vsel %vm918, %v960, -inf
        %966 = vmax.xlane.f32.xlu0 %v965
        %v967 = vpop.xlane.xlu0 %966
        %v968 = vsub.f32 %v960, %v967
        %v969 = vmul.f32 %v968, 1.442695
        %v970 = vpow.pop %v969
        %v971 = vsel %vm918, %v970, 0.0
        %972 = vadd.xlane.f32.xlu0 %v971
        %v973 = vpop.xlane.xlu0 %972
        %v974 = vrcp.pop %v973
        %v975 = vmul.f32 %v970, %v974
        %v976 = vadd.f32 %v975, 0.0
        %v977 = vpack.c.bf16 %v975, %v975
        %v979 = vsel %vm918, %v977, 0
        %vm981 = vcmask 1043456
        %v983 = vsel %vm981, %v917, 0
        %985 = vmatprep.subr.bf16.mxu0 0
        %986 = vmatpush1.bf16.msra.mxu0 %v983
        %987 = vmatprep.subr.bf16.mxu0 0
        %988 = vmatpush1.bf16.msra.mxu0 0
        %989 = vmatprep.subr.bf16.mxu0 0
        %990 = vmatpush1.bf16.msra.mxu0 0
        %991 = vmatprep.subr.bf16.mxu0 0
        %992 = vmatpush1.bf16.msra.mxu0 0
        %993 = vmatprep.subr.bf16.mxu0 0
        %994 = vmatpush1.bf16.msra.mxu0 0
        %995 = vmatprep.subr.bf16.mxu0 0
        %996 = vmatpush1.bf16.msra.mxu0 0
        %997 = vmatprep.subr.bf16.mxu0 0
        %998 = vmatpush1.bf16.msra.mxu0 0
        %999 = vmatprep.subr.bf16.mxu0 0
        %1000 = vmatpush1.bf16.msra.mxu0 0
        %1001 = vmatprep.subr.bf16.mxu0 0
        %1002 = vmatpush1.bf16.msra.mxu0 0
        %1003 = vmatprep.subr.bf16.mxu0 0
        %1004 = vmatpush1.bf16.msra.mxu0 0
        %1005 = vmatprep.subr.bf16.mxu0 0
        %1006 = vmatpush1.bf16.msra.mxu0 0
        %1007 = vmatprep.subr.bf16.mxu0 0
        %1008 = vmatpush1.bf16.msra.mxu0 0
        %1009 = vmatprep.subr.bf16.mxu0 0
        %1010 = vmatpush1.bf16.msra.mxu0 0
        %1011 = vmatprep.subr.bf16.mxu0 0
        %1012 = vmatpush1.bf16.msra.mxu0 0
        %1013 = vmatprep.subr.bf16.mxu0 0
        %1014 = vmatpush1.bf16.msra.mxu0 0
        %1015 = vmatprep.subr.bf16.mxu0 0
        %1016 = vmatpush1.bf16.msra.mxu0 0
        %1017 = vmatprep.mubr.bf16.mxu0 0
        %1018 = vmatmul.mubr.bf16.gmra.mrb[0].mxu0 %v979
        %v1019 = vpop.f32.mrb[0].mxu0
        %v1020 = vadd.f32 0.0, %v1019
        %v1021 = vpop.f32.mrb[0].mxu0
        %v1022 = vpop.f32.mrb[0].mxu0
        %v1023 = vpop.f32.mrb[0].mxu0
        %1024 = vdwg.mxu0
        %v1025 = vpack.c.bf16 %v1020, %v1020
        %1027 = vrot.lane.b32.xlu0 %v915, 120
        %v1028 = vpop.permute.xlu0 %1027
        %1030 = vrot.lane.b32.xlu0 %v916, 120
        %v1031 = vpop.permute.xlu0 %1030
        %v1033 = vsel %vm918, %v1028, 0
        %v1036 = vsel %vm918, %v1031, 0
        %1038 = vmatprep.subr.bf16.mxu0 0
        %1039 = vmatpush1.bf16.xpose.msra.mxu0 %v1036
        %1040 = vmatprep.subr.bf16.mxu0 0
        %1041 = vmatpush1.bf16.xpose.msra.mxu0 0
        %1042 = vmatprep.subr.bf16.mxu0 0
        %1043 = vmatpush1.bf16.xpose.msra.mxu0 0
        %1044 = vmatprep.subr.bf16.mxu0 0
        %1045 = vmatpush1.bf16.xpose.msra.mxu0 0
        %1046 = vmatprep.subr.bf16.mxu0 0
        %1047 = vmatpush1.bf16.xpose.msra.mxu0 0
        %1048 = vmatprep.subr.bf16.mxu0 0
        %1049 = vmatpush1.bf16.xpose.msra.mxu0 0
        %1050 = vmatprep.subr.bf16.mxu0 0
        %1051 = vmatpush1.bf16.xpose.msra.mxu0 0
        %1052 = vmatprep.subr.bf16.mxu0 0
        %1053 = vmatpush1.bf16.xpose.msra.mxu0 0
        %1054 = vmatprep.subr.bf16.mxu0 0
        %1055 = vmatpush1.bf16.xpose.msra.mxu0 0
        %1056 = vmatprep.subr.bf16.mxu0 0
        %1057 = vmatpush1.bf16.xpose.msra.mxu0 0
        %1058 = vmatprep.subr.bf16.mxu0 0
        %1059 = vmatpush1.bf16.xpose.msra.mxu0 0
        %1060 = vmatprep.subr.bf16.mxu0 0
        %1061 = vmatpush1.bf16.xpose.msra.mxu0 0
        %1062 = vmatprep.subr.bf16.mxu0 0
        %1063 = vmatpush1.bf16.xpose.msra.mxu0 0
        %1064 = vmatprep.subr.bf16.mxu0 0
        %1065 = vmatpush1.bf16.xpose.msra.mxu0 0
        %1066 = vmatprep.subr.bf16.mxu0 0
        %1067 = vmatpush1.bf16.xpose.msra.mxu0 0
        %1068 = vmatprep.subr.bf16.mxu0 0
        %1069 = vmatpush1.bf16.xpose.msra.mxu0 0
        %1070 = vmatprep.mubr.bf16.mxu0 0
        %1071 = vmatmul.mubr.bf16.gmra.mrb[0].mxu0 %v1033
        %v1072 = vpop.f32.mrb[0].mxu0
        %v1073 = vadd.f32 0.0, %v1072
        %v1074 = vpop.f32.mrb[0].mxu0
        %v1075 = vpop.f32.mrb[0].mxu0
        %v1076 = vpop.f32.mrb[0].mxu0
        %1077 = vdwg.mxu0
        %v1078 = vsel %vm918, %v1073, -inf
        %1079 = vmax.xlane.f32.xlu0 %v1078
        %v1080 = vpop.xlane.xlu0 %1079
        %v1081 = vsub.f32 %v1073, %v1080
        %v1082 = vmul.f32 %v1081, 1.442695
        %v1083 = vpow.pop %v1082
        %v1084 = vsel %vm918, %v1083, 0.0
        %1085 = vadd.xlane.f32.xlu0 %v1084
        %v1086 = vpop.xlane.xlu0 %1085
        %v1087 = vrcp.pop %v1086
        %v1088 = vmul.f32 %v1083, %v1087
        %v1089 = vadd.f32 %v976, %v1088
        %v1090 = vpack.c.bf16 %v1088, %v1088
        %1092 = vrot.lane.b32.xlu0 %v917, 120
        %v1093 = vpop.permute.xlu0 %1092
        %v1095 = vsel %vm918, %v1090, 0
        %v1098 = vsel %vm981, %v1093, 0
        %1100 = vmatprep.subr.bf16.mxu0 0
        %1101 = vmatpush1.bf16.msra.mxu0 %v1098
        %1102 = vmatprep.subr.bf16.mxu0 0
        %1103 = vmatpush1.bf16.msra.mxu0 0
        %1104 = vmatprep.subr.bf16.mxu0 0
        %1105 = vmatpush1.bf16.msra.mxu0 0
        %1106 = vmatprep.subr.bf16.mxu0 0
        %1107 = vmatpush1.bf16.msra.mxu0 0
        %1108 = vmatprep.subr.bf16.mxu0 0
        %1109 = vmatpush1.bf16.msra.mxu0 0
        %1110 = vmatprep.subr.bf16.mxu0 0
        %1111 = vmatpush1.bf16.msra.mxu0 0
        %1112 = vmatprep.subr.bf16.mxu0 0
        %1113 = vmatpush1.bf16.msra.mxu0 0
        %1114 = vmatprep.subr.bf16.mxu0 0
        %1115 = vmatpush1.bf16.msra.mxu0 0
        %1116 = vmatprep.subr.bf16.mxu0 0
        %1117 = vmatpush1.bf16.msra.mxu0 0
        %1118 = vmatprep.subr.bf16.mxu0 0
        %1119 = vmatpush1.bf16.msra.mxu0 0
        %1120 = vmatprep.subr.bf16.mxu0 0
        %1121 = vmatpush1.bf16.msra.mxu0 0
        %1122 = vmatprep.subr.bf16.mxu0 0
        %1123 = vmatpush1.bf16.msra.mxu0 0
        %1124 = vmatprep.subr.bf16.mxu0 0
        %1125 = vmatpush1.bf16.msra.mxu0 0
        %1126 = vmatprep.subr.bf16.mxu0 0
        %1127 = vmatpush1.bf16.msra.mxu0 0
        %1128 = vmatprep.subr.bf16.mxu0 0
        %1129 = vmatpush1.bf16.msra.mxu0 0
        %1130 = vmatprep.subr.bf16.mxu0 0
        %1131 = vmatpush1.bf16.msra.mxu0 0
        %1132 = vmatprep.mubr.bf16.mxu0 0
        %1133 = vmatmul.mubr.bf16.gmra.mrb[0].mxu0 %v1095
        %v1134 = vpop.f32.mrb[0].mxu0
        %v1135 = vadd.f32 0.0, %v1134
        %v1136 = vpop.f32.mrb[0].mxu0
        %v1137 = vpop.f32.mrb[0].mxu0
        %v1138 = vpop.f32.mrb[0].mxu0
        %1139 = vdwg.mxu0
        %v1140 = vpack.c.bf16 %v1135, %v1135
        %v1142 = vsel %vm918, %v1140, 0
        %v1145 = vsel %vm981, %v912, 0
        %1147 = vmatprep.subr.bf16.mxu0 0
        %1148 = vmatpush1.bf16.msra.mxu0 %v1145
        %1149 = vmatprep.subr.bf16.mxu0 0
        %1150 = vmatpush1.bf16.msra.mxu0 0
        %1151 = vmatprep.subr.bf16.mxu0 0
        %1152 = vmatpush1.bf16.msra.mxu0 0
        %1153 = vmatprep.subr.bf16.mxu0 0
        %1154 = vmatpush1.bf16.msra.mxu0 0
        %1155 = vmatprep.subr.bf16.mxu0 0
        %1156 = vmatpush1.bf16.msra.mxu0 0
        %1157 = vmatprep.subr.bf16.mxu0 0
        %1158 = vmatpush1.bf16.msra.mxu0 0
        %1159 = vmatprep.subr.bf16.mxu0 0
        %1160 = vmatpush1.bf16.msra.mxu0 0
        %1161 = vmatprep.subr.bf16.mxu0 0
        %1162 = vmatpush1.bf16.msra.mxu0 0
        %1163 = vmatprep.subr.bf16.mxu0 0
        %1164 = vmatpush1.bf16.msra.mxu0 0
        %1165 = vmatprep.subr.bf16.mxu0 0
        %1166 = vmatpush1.bf16.msra.mxu0 0
        %1167 = vmatprep.subr.bf16.mxu0 0
        %1168 = vmatpush1.bf16.msra.mxu0 0
        %1169 = vmatprep.subr.bf16.mxu0 0
        %1170 = vmatpush1.bf16.msra.mxu0 0
        %1171 = vmatprep.subr.bf16.mxu0 0
        %1172 = vmatpush1.bf16.msra.mxu0 0
        %1173 = vmatprep.subr.bf16.mxu0 0
        %1174 = vmatpush1.bf16.msra.mxu0 0
        %1175 = vmatprep.subr.bf16.mxu0 0
        %1176 = vmatpush1.bf16.msra.mxu0 0
        %1177 = vmatprep.subr.bf16.mxu0 0
        %1178 = vmatpush1.bf16.msra.mxu0 0
        %1179 = vmatprep.mubr.bf16.mxu0 0
        %1180 = vmatmul.mubr.bf16.gmra.mrb[0].mxu0 %v1142
        %v1181 = vpop.f32.mrb[0].mxu0
        %v1182 = vadd.f32 0.0, %v1181
        %v1183 = vpop.f32.mrb[0].mxu0
        %v1184 = vpop.f32.mrb[0].mxu0
        %v1185 = vpop.f32.mrb[0].mxu0
        %1186 = vdwg.mxu0
        %v1188 = vsel %vm918, %v1025, 0
        %v1191 = vsel %vm981, %v911, 0
        %1193 = vmatprep.subr.bf16.mxu0 0
        %1194 = vmatpush1.bf16.msra.mxu0 %v1191
        %1195 = vmatprep.subr.bf16.mxu0 0
        %1196 = vmatpush1.bf16.msra.mxu0 0
        %1197 = vmatprep.subr.bf16.mxu0 0
        %1198 = vmatpush1.bf16.msra.mxu0 0
        %1199 = vmatprep.subr.bf16.mxu0 0
        %1200 = vmatpush1.bf16.msra.mxu0 0
        %1201 = vmatprep.subr.bf16.mxu0 0
        %1202 = vmatpush1.bf16.msra.mxu0 0
        %1203 = vmatprep.subr.bf16.mxu0 0
        %1204 = vmatpush1.bf16.msra.mxu0 0
        %1205 = vmatprep.subr.bf16.mxu0 0
        %1206 = vmatpush1.bf16.msra.mxu0 0
        %1207 = vmatprep.subr.bf16.mxu0 0
        %1208 = vmatpush1.bf16.msra.mxu0 0
        %1209 = vmatprep.subr.bf16.mxu0 0
        %1210 = vmatpush1.bf16.msra.mxu0 0
        %1211 = vmatprep.subr.bf16.mxu0 0
        %1212 = vmatpush1.bf16.msra.mxu0 0
        %1213 = vmatprep.subr.bf16.mxu0 0
        %1214 = vmatpush1.bf16.msra.mxu0 0
        %1215 = vmatprep.subr.bf16.mxu0 0
        %1216 = vmatpush1.bf16.msra.mxu0 0
        %1217 = vmatprep.subr.bf16.mxu0 0
        %1218 = vmatpush1.bf16.msra.mxu0 0
        %1219 = vmatprep.subr.bf16.mxu0 0
        %1220 = vmatpush1.bf16.msra.mxu0 0
        %1221 = vmatprep.subr.bf16.mxu0 0
        %1222 = vmatpush1.bf16.msra.mxu0 0
        %1223 = vmatprep.subr.bf16.mxu0 0
        %1224 = vmatpush1.bf16.msra.mxu0 0
        %1225 = vmatprep.mubr.bf16.mxu0 0
        %1226 = vmatmul.mubr.bf16.gmra.mrb[0].mxu0 %v1188
        %v1227 = vpop.f32.mrb[0].mxu0
        %v1228 = vadd.f32 %v1182, %v1227
        %v1229 = vpop.f32.mrb[0].mxu0
        %v1230 = vpop.f32.mrb[0].mxu0
        %v1231 = vpop.f32.mrb[0].mxu0
        %1232 = vdwg.mxu0
        %1233 = vrot.lane.b32.xlu0 %v915, 112
        %v1234 = vpop.permute.xlu0 %1233
        %1235 = vrot.lane.b32.xlu0 %v916, 112
        %v1236 = vpop.permute.xlu0 %1235
        %v1238 = vsel %vm918, %v1234, 0
        %v1241 = vsel %vm918, %v1236, 0
        %1243 = vmatprep.subr.bf16.mxu0 0
        %1244 = vmatpush1.bf16.xpose.msra.mxu0 %v1241
        %1245 = vmatprep.subr.bf16.mxu0 0
        %1246 = vmatpush1.bf16.xpose.msra.mxu0 0
        %1247 = vmatprep.subr.bf16.mxu0 0
        %1248 = vmatpush1.bf16.xpose.msra.mxu0 0
        %1249 = vmatprep.subr.bf16.mxu0 0
        %1250 = vmatpush1.bf16.xpose.msra.mxu0 0
        %1251 = vmatprep.subr.bf16.mxu0 0
        %1252 = vmatpush1.bf16.xpose.msra.mxu0 0
        %1253 = vmatprep.subr.bf16.mxu0 0
        %1254 = vmatpush1.bf16.xpose.msra.mxu0 0
        %1255 = vmatprep.subr.bf16.mxu0 0
        %1256 = vmatpush1.bf16.xpose.msra.mxu0 0
        %1257 = vmatprep.subr.bf16.mxu0 0
        %1258 = vmatpush1.bf16.xpose.msra.mxu0 0
        %1259 = vmatprep.subr.bf16.mxu0 0
        %1260 = vmatpush1.bf16.xpose.msra.mxu0 0
        %1261 = vmatprep.subr.bf16.mxu0 0
        %1262 = vmatpush1.bf16.xpose.msra.mxu0 0
        %1263 = vmatprep.subr.bf16.mxu0 0
        %1264 = vmatpush1.bf16.xpose.msra.mxu0 0
        %1265 = vmatprep.subr.bf16.mxu0 0
        %1266 = vmatpush1.bf16.xpose.msra.mxu0 0
        %1267 = vmatprep.subr.bf16.mxu0 0
        %1268 = vmatpush1.bf16.xpose.msra.mxu0 0
        %1269 = vmatprep.subr.bf16.mxu0 0
        %1270 = vmatpush1.bf16.xpose.msra.mxu0 0
        %1271 = vmatprep.subr.bf16.mxu0 0
        %1272 = vmatpush1.bf16.xpose.msra.mxu0 0
        %1273 = vmatprep.subr.bf16.mxu0 0
        %1274 = vmatpush1.bf16.xpose.msra.mxu0 0
        %1275 = vmatprep.mubr.bf16.mxu0 0
        %1276 = vmatmul.mubr.bf16.gmra.mrb[0].mxu0 %v1238
        %v1277 = vpop.f32.mrb[0].mxu0
        %v1278 = vadd.f32 0.0, %v1277
        %v1279 = vpop.f32.mrb[0].mxu0
        %v1280 = vpop.f32.mrb[0].mxu0
        %v1281 = vpop.f32.mrb[0].mxu0
        %1282 = vdwg.mxu0
        %v1283 = vsel %vm918, %v1278, -inf
        %1284 = vmax.xlane.f32.xlu0 %v1283
        %v1285 = vpop.xlane.xlu0 %1284
        %v1286 = vsub.f32 %v1278, %v1285
        %v1287 = vmul.f32 %v1286, 1.442695
        %v1288 = vpow.pop %v1287
        %v1289 = vsel %vm918, %v1288, 0.0
        %1290 = vadd.xlane.f32.xlu0 %v1289
        %v1291 = vpop.xlane.xlu0 %1290
        %v1292 = vrcp.pop %v1291
        %v1293 = vmul.f32 %v1288, %v1292
        %v1294 = vadd.f32 %v1089, %v1293
        %v1295 = vpack.c.bf16 %v1293, %v1293
        %1296 = vrot.lane.b32.xlu0 %v917, 112
        %v1297 = vpop.permute.xlu0 %1296
        %v1299 = vsel %vm918, %v1295, 0
        %v1302 = vsel %vm981, %v1297, 0
        %1304 = vmatprep.subr.bf16.mxu0 0
        %1305 = vmatpush1.bf16.msra.mxu0 %v1302
        %1306 = vmatprep.subr.bf16.mxu0 0
        %1307 = vmatpush1.bf16.msra.mxu0 0
        %1308 = vmatprep.subr.bf16.mxu0 0
        %1309 = vmatpush1.bf16.msra.mxu0 0
        %1310 = vmatprep.subr.bf16.mxu0 0
        %1311 = vmatpush1.bf16.msra.mxu0 0
        %1312 = vmatprep.subr.bf16.mxu0 0
        %1313 = vmatpush1.bf16.msra.mxu0 0
        %1314 = vmatprep.subr.bf16.mxu0 0
        %1315 = vmatpush1.bf16.msra.mxu0 0
        %1316 = vmatprep.subr.bf16.mxu0 0
        %1317 = vmatpush1.bf16.msra.mxu0 0
        %1318 = vmatprep.subr.bf16.mxu0 0
        %1319 = vmatpush1.bf16.msra.mxu0 0
        %1320 = vmatprep.subr.bf16.mxu0 0
        %1321 = vmatpush1.bf16.msra.mxu0 0
        %1322 = vmatprep.subr.bf16.mxu0 0
        %1323 = vmatpush1.bf16.msra.mxu0 0
        %1324 = vmatprep.subr.bf16.mxu0 0
        %1325 = vmatpush1.bf16.msra.mxu0 0
        %1326 = vmatprep.subr.bf16.mxu0 0
        %1327 = vmatpush1.bf16.msra.mxu0 0
        %1328 = vmatprep.subr.bf16.mxu0 0
        %1329 = vmatpush1.bf16.msra.mxu0 0
        %1330 = vmatprep.subr.bf16.mxu0 0
        %1331 = vmatpush1.bf16.msra.mxu0 0
        %1332 = vmatprep.subr.bf16.mxu0 0
        %1333 = vmatpush1.bf16.msra.mxu0 0
        %1334 = vmatprep.subr.bf16.mxu0 0
        %1335 = vmatpush1.bf16.msra.mxu0 0
        %1336 = vmatprep.mubr.bf16.mxu0 0
        %1337 = vmatmul.mubr.bf16.gmra.mrb[0].mxu0 %v1299
        %v1338 = vpop.f32.mrb[0].mxu0
        %v1339 = vadd.f32 0.0, %v1338
        %v1340 = vpop.f32.mrb[0].mxu0
        %v1341 = vpop.f32.mrb[0].mxu0
        %v1342 = vpop.f32.mrb[0].mxu0
        %1343 = vdwg.mxu0
        %v1344 = vpack.c.bf16 %v1339, %v1339
        %v1346 = vsel %vm918, %v1344, 0
        %v1349 = vsel %vm981, %v913, 0
        %1351 = vmatprep.subr.bf16.mxu0 0
        %1352 = vmatpush1.bf16.msra.mxu0 %v1349
        %1353 = vmatprep.subr.bf16.mxu0 0
        %1354 = vmatpush1.bf16.msra.mxu0 0
        %1355 = vmatprep.subr.bf16.mxu0 0
        %1356 = vmatpush1.bf16.msra.mxu0 0
        %1357 = vmatprep.subr.bf16.mxu0 0
        %1358 = vmatpush1.bf16.msra.mxu0 0
        %1359 = vmatprep.subr.bf16.mxu0 0
        %1360 = vmatpush1.bf16.msra.mxu0 0
        %1361 = vmatprep.subr.bf16.mxu0 0
        %1362 = vmatpush1.bf16.msra.mxu0 0
        %1363 = vmatprep.subr.bf16.mxu0 0
        %1364 = vmatpush1.bf16.msra.mxu0 0
        %1365 = vmatprep.subr.bf16.mxu0 0
        %1366 = vmatpush1.bf16.msra.mxu0 0
        %1367 = vmatprep.subr.bf16.mxu0 0
        %1368 = vmatpush1.bf16.msra.mxu0 0
        %1369 = vmatprep.subr.bf16.mxu0 0
        %1370 = vmatpush1.bf16.msra.mxu0 0
        %1371 = vmatprep.subr.bf16.mxu0 0
        %1372 = vmatpush1.bf16.msra.mxu0 0
        %1373 = vmatprep.subr.bf16.mxu0 0
        %1374 = vmatpush1.bf16.msra.mxu0 0
        %1375 = vmatprep.subr.bf16.mxu0 0
        %1376 = vmatpush1.bf16.msra.mxu0 0
        %1377 = vmatprep.subr.bf16.mxu0 0
        %1378 = vmatpush1.bf16.msra.mxu0 0
        %1379 = vmatprep.subr.bf16.mxu0 0
        %1380 = vmatpush1.bf16.msra.mxu0 0
        %1381 = vmatprep.subr.bf16.mxu0 0
        %1382 = vmatpush1.bf16.msra.mxu0 0
        %1383 = vmatprep.mubr.bf16.mxu0 0
        %1384 = vmatmul.mubr.bf16.gmra.mrb[0].mxu0 %v1346
        %v1385 = vpop.f32.mrb[0].mxu0
        %v1386 = vadd.f32 0.0, %v1385
        %v1387 = vpop.f32.mrb[0].mxu0
        %v1388 = vpop.f32.mrb[0].mxu0
        %v1389 = vpop.f32.mrb[0].mxu0
        %1390 = vdwg.mxu0
        %v1391 = vadd.f32 %v1228, %v1386
        %1392 = vrot.lane.b32.xlu0 %v915, 104
        %v1393 = vpop.permute.xlu0 %1392
        %1394 = vrot.lane.b32.xlu0 %v916, 104
        %v1395 = vpop.permute.xlu0 %1394
        %v1397 = vsel %vm918, %v1393, 0
        %v1400 = vsel %vm918, %v1395, 0
        %1402 = vmatprep.subr.bf16.mxu0 0
        %1403 = vmatpush1.bf16.xpose.msra.mxu0 %v1400
        %1404 = vmatprep.subr.bf16.mxu0 0
        %1405 = vmatpush1.bf16.xpose.msra.mxu0 0
        %1406 = vmatprep.subr.bf16.mxu0 0
        %1407 = vmatpush1.bf16.xpose.msra.mxu0 0
        %1408 = vmatprep.subr.bf16.mxu0 0
        %1409 = vmatpush1.bf16.xpose.msra.mxu0 0
        %1410 = vmatprep.subr.bf16.mxu0 0
        %1411 = vmatpush1.bf16.xpose.msra.mxu0 0
        %1412 = vmatprep.subr.bf16.mxu0 0
        %1413 = vmatpush1.bf16.xpose.msra.mxu0 0
        %1414 = vmatprep.subr.bf16.mxu0 0
        %1415 = vmatpush1.bf16.xpose.msra.mxu0 0
        %1416 = vmatprep.subr.bf16.mxu0 0
        %1417 = vmatpush1.bf16.xpose.msra.mxu0 0
        %1418 = vmatprep.subr.bf16.mxu0 0
        %1419 = vmatpush1.bf16.xpose.msra.mxu0 0
        %1420 = vmatprep.subr.bf16.mxu0 0
        %1421 = vmatpush1.bf16.xpose.msra.mxu0 0
        %1422 = vmatprep.subr.bf16.mxu0 0
        %1423 = vmatpush1.bf16.xpose.msra.mxu0 0
        %1424 = vmatprep.subr.bf16.mxu0 0
        %1425 = vmatpush1.bf16.xpose.msra.mxu0 0
        %1426 = vmatprep.subr.bf16.mxu0 0
        %1427 = vmatpush1.bf16.xpose.msra.mxu0 0
        %1428 = vmatprep.subr.bf16.mxu0 0
        %1429 = vmatpush1.bf16.xpose.msra.mxu0 0
        %1430 = vmatprep.subr.bf16.mxu0 0
        %1431 = vmatpush1.bf16.xpose.msra.mxu0 0
        %1432 = vmatprep.subr.bf16.mxu0 0
        %1433 = vmatpush1.bf16.xpose.msra.mxu0 0
        %1434 = vmatprep.mubr.bf16.mxu0 0
        %1435 = vmatmul.mubr.bf16.gmra.mrb[0].mxu0 %v1397
        %v1436 = vpop.f32.mrb[0].mxu0
        %v1437 = vadd.f32 0.0, %v1436
        %v1438 = vpop.f32.mrb[0].mxu0
        %v1439 = vpop.f32.mrb[0].mxu0
        %v1440 = vpop.f32.mrb[0].mxu0
        %1441 = vdwg.mxu0
        %v1442 = vsel %vm918, %v1437, -inf
        %1443 = vmax.xlane.f32.xlu0 %v1442
        %v1444 = vpop.xlane.xlu0 %1443
        %v1445 = vsub.f32 %v1437, %v1444
        %v1446 = vmul.f32 %v1445, 1.442695
        %v1447 = vpow.pop %v1446
        %v1448 = vsel %vm918, %v1447, 0.0
        %1449 = vadd.xlane.f32.xlu0 %v1448
        %v1450 = vpop.xlane.xlu0 %1449
        %v1451 = vrcp.pop %v1450
        %v1452 = vmul.f32 %v1447, %v1451
        %v1453 = vadd.f32 %v1294, %v1452
        %v1454 = vpack.c.bf16 %v1452, %v1452
        %1455 = vrot.lane.b32.xlu0 %v917, 104
        %v1456 = vpop.permute.xlu0 %1455
        %v1458 = vsel %vm918, %v1454, 0
        %v1461 = vsel %vm981, %v1456, 0
        %1463 = vmatprep.subr.bf16.mxu0 0
        %1464 = vmatpush1.bf16.msra.mxu0 %v1461
        %1465 = vmatprep.subr.bf16.mxu0 0
        %1466 = vmatpush1.bf16.msra.mxu0 0
        %1467 = vmatprep.subr.bf16.mxu0 0
        %1468 = vmatpush1.bf16.msra.mxu0 0
        %1469 = vmatprep.subr.bf16.mxu0 0
        %1470 = vmatpush1.bf16.msra.mxu0 0
        %1471 = vmatprep.subr.bf16.mxu0 0
        %1472 = vmatpush1.bf16.msra.mxu0 0
        %1473 = vmatprep.subr.bf16.mxu0 0
        %1474 = vmatpush1.bf16.msra.mxu0 0
        %1475 = vmatprep.subr.bf16.mxu0 0
        %1476 = vmatpush1.bf16.msra.mxu0 0
        %1477 = vmatprep.subr.bf16.mxu0 0
        %1478 = vmatpush1.bf16.msra.mxu0 0
        %1479 = vmatprep.subr.bf16.mxu0 0
        %1480 = vmatpush1.bf16.msra.mxu0 0
        %1481 = vmatprep.subr.bf16.mxu0 0
        %1482 = vmatpush1.bf16.msra.mxu0 0
        %1483 = vmatprep.subr.bf16.mxu0 0
        %1484 = vmatpush1.bf16.msra.mxu0 0
        %1485 = vmatprep.subr.bf16.mxu0 0
        %1486 = vmatpush1.bf16.msra.mxu0 0
        %1487 = vmatprep.subr.bf16.mxu0 0
        %1488 = vmatpush1.bf16.msra.mxu0 0
        %1489 = vmatprep.subr.bf16.mxu0 0
        %1490 = vmatpush1.bf16.msra.mxu0 0
        %1491 = vmatprep.subr.bf16.mxu0 0
        %1492 = vmatpush1.bf16.msra.mxu0 0
        %1493 = vmatprep.subr.bf16.mxu0 0
        %1494 = vmatpush1.bf16.msra.mxu0 0
        %1495 = vmatprep.mubr.bf16.mxu0 0
        %1496 = vmatmul.mubr.bf16.gmra.mrb[0].mxu0 %v1458
        %v1497 = vpop.f32.mrb[0].mxu0
        %v1498 = vadd.f32 0.0, %v1497
        %v1499 = vpop.f32.mrb[0].mxu0
        %v1500 = vpop.f32.mrb[0].mxu0
        %v1501 = vpop.f32.mrb[0].mxu0
        %1502 = vdwg.mxu0
        %v1503 = vpack.c.bf16 %v1498, %v1498
        %v1505 = vsel %vm918, %v1503, 0
        %v1508 = vsel %vm981, %v914, 0
        %1510 = vmatprep.subr.bf16.mxu0 0
        %1511 = vmatpush1.bf16.msra.mxu0 %v1508
        %1512 = vmatprep.subr.bf16.mxu0 0
        %1513 = vmatpush1.bf16.msra.mxu0 0
        %1514 = vmatprep.subr.bf16.mxu0 0
        %1515 = vmatpush1.bf16.msra.mxu0 0
        %1516 = vmatprep.subr.bf16.mxu0 0
        %1517 = vmatpush1.bf16.msra.mxu0 0
        %1518 = vmatprep.subr.bf16.mxu0 0
        %1519 = vmatpush1.bf16.msra.mxu0 0
        %1520 = vmatprep.subr.bf16.mxu0 0
        %1521 = vmatpush1.bf16.msra.mxu0 0
        %1522 = vmatprep.subr.bf16.mxu0 0
        %1523 = vmatpush1.bf16.msra.mxu0 0
        %1524 = vmatprep.subr.bf16.mxu0 0
        %1525 = vmatpush1.bf16.msra.mxu0 0
        %1526 = vmatprep.subr.bf16.mxu0 0
        %1527 = vmatpush1.bf16.msra.mxu0 0
        %1528 = vmatprep.subr.bf16.mxu0 0
        %1529 = vmatpush1.bf16.msra.mxu0 0
        %1530 = vmatprep.subr.bf16.mxu0 0
        %1531 = vmatpush1.bf16.msra.mxu0 0
        %1532 = vmatprep.subr.bf16.mxu0 0
        %1533 = vmatpush1.bf16.msra.mxu0 0
        %1534 = vmatprep.subr.bf16.mxu0 0
        %1535 = vmatpush1.bf16.msra.mxu0 0
        %1536 = vmatprep.subr.bf16.mxu0 0
        %1537 = vmatpush1.bf16.msra.mxu0 0
        %1538 = vmatprep.subr.bf16.mxu0 0
        %1539 = vmatpush1.bf16.msra.mxu0 0
        %1540 = vmatprep.subr.bf16.mxu0 0
        %1541 = vmatpush1.bf16.msra.mxu0 0
        %1542 = vmatprep.mubr.bf16.mxu0 0
        %1543 = vmatmul.mubr.bf16.gmra.mrb[0].mxu0 %v1505
        %v1544 = vpop.f32.mrb[0].mxu0
        %v1545 = vadd.f32 0.0, %v1544
        %v1546 = vpop.f32.mrb[0].mxu0
        %v1547 = vpop.f32.mrb[0].mxu0
        %v1548 = vpop.f32.mrb[0].mxu0
        %1549 = vdwg.mxu0
        %v1550 = vadd.f32 %v1391, %v1545
        %v1551 = vadd.f32 %v686, %v1550
        %v1552 = vld [vmem:[#allocation11] sm:$0x1]
        %v1554 = vlaneseq
        %v1555 = vshrl.u32 %v1554, 7
        %v1556 = vsub.s32 0, %v1555
        %v1557 = vrot.slane %v1552, %v1556
        %v1559 = vadd.f32 %v1551, %v1557
        %v1560 = vsel %vm687, %v1559, 0.0
        %1561 = vadd.xlane.f32.xlu0 %v1560
        %v1562 = vpop.xlane.xlu0 %1561
        %v1563 = vmul.f32 %v1562, %v691
        %v1564 = vsub.f32 %v1559, %v1563
        %v1565 = vmul.f32 %v1564, %v1564
        %v1566 = vsel %vm687, %v1565, 0.0
        %1567 = vadd.xlane.f32.xlu0 %v1566
        %v1568 = vpop.xlane.xlu0 %1567
        %v1569 = vmul.f32 %v1568, %v691
        %v1570 = vadd.f32 %v1569, 1e-06
        %v1571 = vrsqrt.pop %v1570
        %v1572 = vmul.f32 %v1564, %v1571
        %v1573 = vld [vmem:[#allocation13] sm:$0x1]
        %v1575 = vlaneseq
        %v1576 = vshrl.u32 %v1575, 7
        %v1577 = vsub.s32 0, %v1576
        %v1578 = vrot.slane %v1573, %v1577
        %v1580 = vmul.f32 %v1572, %v1578
        %v1581 = vld [vmem:[#allocation14] sm:$0x1]
        %v1583 = vlaneseq
        %v1584 = vshrl.u32 %v1583, 7
        %v1585 = vsub.s32 0, %v1584
        %v1586 = vrot.slane %v1581, %v1585
        %v1588 = vadd.f32 %v1580, %v1586
        %v1589 = vpack.c.bf16 %v1588, %v1588
        %v1590 = vld [vmem:[%s13] sm:$0xf]
        %v1591 = vld [vmem:[%s13 + $0x4] sm:$0xf]
        %v1592 = vld [vmem:[%s13 + $0x8] sm:$0xf]
        %v1593 = vld [vmem:[%s13 + $0xc] sm:$0xf]
        %v1594 = vld [vmem:[%s14] sm:$0x1]
        %v1596 = vlaneseq
        %v1597 = vshrl.u32 %v1596, 7
        %v1598 = vsub.s32 0, %v1597
        %v1599 = vrot.slane %v1594, %v1598
        %v1605 = vunpack.c.l.b16 %v1590
        %v1606 = vunpack.c.l.b16 %v1591
        %v1607 = vunpack.c.l.b16 %v1592
        %v1608 = vunpack.c.l.b16 %v1593
        %v1609 = vpack.c.b16 %v1606, %v1605
        %v1610 = vpack.c.b16 %v1608, %v1607
        %v1614 = vsel %vm687, %v1589, 0
        %1616 = vmatprep.subr.bf16.mxu0 0
        %1617 = vmatpush1.bf16.msra.mxu0 %v1609
        %1618 = vmatprep.subr.bf16.mxu0 0
        %1619 = vmatpush1.bf16.msra.mxu0 %v1610
        %1620 = vmatprep.subr.bf16.mxu0 0
        %1621 = vmatpush1.bf16.msra.mxu0 0
        %1622 = vmatprep.subr.bf16.mxu0 0
        %1623 = vmatpush1.bf16.msra.mxu0 0
        %1624 = vmatprep.subr.bf16.mxu0 0
        %1625 = vmatpush1.bf16.msra.mxu0 0
        %1626 = vmatprep.subr.bf16.mxu0 0
        %1627 = vmatpush1.bf16.msra.mxu0 0
        %1628 = vmatprep.subr.bf16.mxu0 0
        %1629 = vmatpush1.bf16.msra.mxu0 0
        %1630 = vmatprep.subr.bf16.mxu0 0
        %1631 = vmatpush1.bf16.msra.mxu0 0
        %1632 = vmatprep.subr.bf16.mxu0 0
        %1633 = vmatpush1.bf16.msra.mxu0 0
        %1634 = vmatprep.subr.bf16.mxu0 0
        %1635 = vmatpush1.bf16.msra.mxu0 0
        %1636 = vmatprep.subr.bf16.mxu0 0
        %1637 = vmatpush1.bf16.msra.mxu0 0
        %1638 = vmatprep.subr.bf16.mxu0 0
        %1639 = vmatpush1.bf16.msra.mxu0 0
        %1640 = vmatprep.subr.bf16.mxu0 0
        %1641 = vmatpush1.bf16.msra.mxu0 0
        %1642 = vmatprep.subr.bf16.mxu0 0
        %1643 = vmatpush1.bf16.msra.mxu0 0
        %1644 = vmatprep.subr.bf16.mxu0 0
        %1645 = vmatpush1.bf16.msra.mxu0 0
        %1646 = vmatprep.subr.bf16.mxu0 0
        %1647 = vmatpush1.bf16.msra.mxu0 0
        %1648 = vmatprep.mubr.bf16.mxu0 0
        %1649 = vmatmul.mubr.bf16.gmra.mrb[0].mxu0 %v1614
        %v1650 = vpop.f32.mrb[0].mxu0
        %v1651 = vadd.f32 %v1599, %v1650
        %v1652 = vpop.f32.mrb[0].mxu0
        %v1653 = vpop.f32.mrb[0].mxu0
        %v1654 = vpop.f32.mrb[0].mxu0
        %1655 = vdwg.mxu0
        %v1656 = vmul.f32 %v1651, 0.5
        %v1657 = vmul.f32 %v1651, 0.70710677
        %vm1658 = vcmp.lt.f32.partialorder %v1657, 0.0
        %v1659 = vsel %vm1658, -1.0, 1.0
        %v1660 = vmul.f32 %v1657, %v1659
        %v1661 = vmul.f32 %v1660, 0.3275911
        %v1662 = vadd.f32 %v1661, 1.0
        %v1663 = vrcp.pop %v1662
        %v1664 = vmul.f32 1.0, %v1663
        %v1665 = vmul.f32 %v1664, 1.0614054
        %v1666 = vadd.f32 %v1665, -1.4531521
        %v1667 = vmul.f32 %v1666, %v1664
        %v1668 = vadd.f32 %v1667, 1.4214138
        %v1669 = vmul.f32 %v1668, %v1664
        %v1670 = vadd.f32 %v1669, -0.28449672
        %v1671 = vmul.f32 %v1670, %v1664
        %v1672 = vadd.f32 %v1671, 0.2548296
        %v1673 = vmul.f32 %v1672, %v1664
        %v1674 = vsub.f32 0.0, %v1660
        %v1675 = vmul.f32 %v1674, %v1660
        %v1676 = vmul.f32 %v1675, 1.442695
        %v1677 = vpow.pop %v1676
        %v1678 = vmul.f32 %v1673, %v1677
        %v1679 = vsub.f32 1.0, %v1678
        %v1680 = vmul.f32 %v1659, %v1679
        %v1681 = vadd.f32 %v1680, 1.0
        %v1682 = vmul.f32 %v1656, %v1681
        %v1683 = vpack.c.bf16 %v1682, %v1682
        %v1684 = vld [vmem:[%s15] sm:$0xf]
        %v1685 = vld [vmem:[%s15 + $0x4] sm:$0xf]
        %v1686 = vld [vmem:[%s15 + $0x8] sm:$0xf]
        %v1687 = vld [vmem:[%s15 + $0xc] sm:$0xf]
        %v1688 = vld [vmem:[%s15 + $0x10] sm:$0xf]
        %v1689 = vld [vmem:[%s15 + $0x14] sm:$0xf]
        %v1690 = vld [vmem:[%s15 + $0x18] sm:$0xf]
        %v1691 = vld [vmem:[%s15 + $0x1c] sm:$0xf]
        %v1692 = vld [vmem:[%s16] sm:$0x1]
        %v1694 = vlaneseq
        %v1695 = vshrl.u32 %v1694, 7
        %v1696 = vsub.s32 0, %v1695
        %v1697 = vrot.slane %v1692, %v1696
        %v1707 = vunpack.c.l.b16 %v1684
        %v1708 = vunpack.c.l.b16 %v1685
        %v1709 = vunpack.c.l.b16 %v1686
        %v1710 = vunpack.c.l.b16 %v1687
        %v1711 = vunpack.c.l.b16 %v1688
        %v1712 = vunpack.c.l.b16 %v1689
        %v1713 = vunpack.c.l.b16 %v1690
        %v1714 = vunpack.c.l.b16 %v1691
        %v1715 = vpack.c.b16 %v1708, %v1707
        %v1716 = vpack.c.b16 %v1710, %v1709
        %v1717 = vpack.c.b16 %v1712, %v1711
        %v1718 = vpack.c.b16 %v1714, %v1713
        %vm1723 = vcmask 523264
        %v1725 = vsel %vm1723, %v1683, 0
        %1727 = vmatprep.subr.bf16.mxu0 0
        %1728 = vmatpush1.bf16.msra.mxu0 %v1715
        %1729 = vmatprep.subr.bf16.mxu0 0
        %1730 = vmatpush1.bf16.msra.mxu0 %v1716
        %1731 = vmatprep.subr.bf16.mxu0 0
        %1732 = vmatpush1.bf16.msra.mxu0 %v1717
        %1733 = vmatprep.subr.bf16.mxu0 0
        %1734 = vmatpush1.bf16.msra.mxu0 %v1718
        %1735 = vmatprep.subr.bf16.mxu0 0
        %1736 = vmatpush1.bf16.msra.mxu0 0
        %1737 = vmatprep.subr.bf16.mxu0 0
        %1738 = vmatpush1.bf16.msra.mxu0 0
        %1739 = vmatprep.subr.bf16.mxu0 0
        %1740 = vmatpush1.bf16.msra.mxu0 0
        %1741 = vmatprep.subr.bf16.mxu0 0
        %1742 = vmatpush1.bf16.msra.mxu0 0
        %1743 = vmatprep.subr.bf16.mxu0 0
        %1744 = vmatpush1.bf16.msra.mxu0 0
        %1745 = vmatprep.subr.bf16.mxu0 0
        %1746 = vmatpush1.bf16.msra.mxu0 0
        %1747 = vmatprep.subr.bf16.mxu0 0
        %1748 = vmatpush1.bf16.msra.mxu0 0
        %1749 = vmatprep.subr.bf16.mxu0 0
        %1750 = vmatpush1.bf16.msra.mxu0 0
        %1751 = vmatprep.subr.bf16.mxu0 0
        %1752 = vmatpush1.bf16.msra.mxu0 0
        %1753 = vmatprep.subr.bf16.mxu0 0
        %1754 = vmatpush1.bf16.msra.mxu0 0
        %1755 = vmatprep.subr.bf16.mxu0 0
        %1756 = vmatpush1.bf16.msra.mxu0 0
        %1757 = vmatprep.subr.bf16.mxu0 0
        %1758 = vmatpush1.bf16.msra.mxu0 0
        %1759 = vmatprep.mubr.bf16.mxu0 0
        %1760 = vmatmul.mubr.bf16.gmra.mrb[0].mxu0 %v1725
        %v1761 = vpop.f32.mrb[0].mxu0
        %v1762 = vadd.f32 %v1697, %v1761
        %v1763 = vpop.f32.mrb[0].mxu0
        %v1764 = vpop.f32.mrb[0].mxu0
        %v1765 = vpop.f32.mrb[0].mxu0
        %1766 = vdwg.mxu0
        %v1767 = vadd.f32 %v1559, %v1762
        %1768 = vst.msk [vmem:[%s673] sm:$0xff] %vm687, %v1767
        %v1769 = vmul.f32 %v1453, 0.25
        %1770 = vst.msk [vmem:[%s680] sm:$0xff] %vm918, %v1769
        %s1771 = sand.u32 %s411, 1
        %s1772 = scalar_lea.sflag [#allocation4], %s1771
        %s1773 = sand.u32 %s411, 1
        %s1774 = smul.addr %s1773, 8
        %s1775 = scalar_lea.vmem [#allocation16], %s1774
        %s1776 = sand.u32 %s437, 1
        %s1777 = scalar_lea.sflag [#allocation18], %s1776
        %s1778 = sand.u32 %s437, 1
        %s1779 = smul.addr %s1778, 8
        %s1780 = scalar_lea.vmem [#allocation17], %s1779
        // Predicated region
        $region121: #{tpu_custom_call.1} parent=87 // pred_check
          %p1781 = pneg %p421
        $region122: #{tpu_custom_call.1} parent=87 // pred_check_branch
          %1783 = sbr.rel (%p1781) target = $region124
        $region123: #{tpu_custom_call.1} parent=87 // pred_region
          %s1785 = ssub.s32 128, 128
          %1786 = vsyncadd %s1772, %s1785
          %s1787 = smul.addr %s41, 128
          %s1788 = scalar_lea.hbm %s17, %s1787
          %s1790 = sshll.u32 %s1775, 4
          %s1791 = int_to_ptr.vmem [resolvable:$true] %s1790
          %1793 = dma.vmem_to_hbm [thread:$0]  %s1791, 128, %s1788, %s1772
        $region124: #{tpu_custom_call.1} parent=87 // pred_fallthru
          _
        // Predicated region
        $region125: #{tpu_custom_call.1} parent=87 // pred_check
          %p1794 = pneg %p447
        $region126: #{tpu_custom_call.1} parent=87 // pred_check_branch
          %1796 = sbr.rel (%p1794) target = $region128
        $region127: #{tpu_custom_call.1} parent=87 // pred_region
          %s1798 = ssub.s32 128, 128
          %1799 = vsyncadd %s1777, %s1798
          %s1800 = smul.addr %s41, 128
          %s1801 = scalar_lea.hbm %s18, %s1800
          %s1803 = sshll.u32 %s1780, 4
          %s1804 = int_to_ptr.vmem [resolvable:$true] %s1803
          %1806 = dma.vmem_to_hbm [thread:$0]  %s1804, 128, %s1801, %s1777
        $region128: #{tpu_custom_call.1} parent=87 // pred_fallthru
          _
      $region88: #{tpu_custom_call.1} parent=5 // pred_fallthru
        _
      %p1807 = scmp.le.s32.totalorder 2, %s36
      // Predicated region
      $region129: #{tpu_custom_call.1} parent=5 // pred_check
        %p1808 = pneg %p1807
      $region130: #{tpu_custom_call.1} parent=5 // pred_check_branch
        %1810 = sbr.rel (%p1808) target = $region132
      $region131: #{tpu_custom_call.1} parent=5 // pred_region
        %s1811 = ssub.s32 %s36, 2
        // Predicated region
        $region133: #{tpu_custom_call.1} parent=131 // pred_check
          %p1812 = pneg %p427
        $region134: #{tpu_custom_call.1} parent=131 // pred_check_branch
          %1814 = sbr.rel (%p1812) target = $region136
        $region135: #{tpu_custom_call.1} parent=131 // pred_region
          %s1815 = sand.u32 %s412, 1
          %s1816 = scalar_lea.sflag [#allocation4], %s1815
          %s1817 = sand.u32 %s412, 1
          %s1818 = smul.addr %s1817, 8
          %s1819 = scalar_lea.vmem [#allocation16], %s1818
          %1820 = dma.done %s1816, 128
        $region136: #{tpu_custom_call.1} parent=131 // pred_fallthru
          _
        // Predicated region
        $region137: #{tpu_custom_call.1} parent=131 // pred_check
          %p1821 = pneg %p453
        $region138: #{tpu_custom_call.1} parent=131 // pred_check_branch
          %1823 = sbr.rel (%p1821) target = $region140
        $region139: #{tpu_custom_call.1} parent=131 // pred_region
          %s1824 = sand.u32 %s438, 1
          %s1825 = scalar_lea.sflag [#allocation18], %s1824
          %s1826 = sand.u32 %s438, 1
          %s1827 = smul.addr %s1826, 8
          %s1828 = scalar_lea.vmem [#allocation17], %s1827
          %1829 = dma.done %s1825, 128
        $region140: #{tpu_custom_call.1} parent=131 // pred_fallthru
          _
      $region132: #{tpu_custom_call.1} parent=5 // pred_fallthru
        _
    $region6: #{tpu_custom_call.1} parent=1 // loop_footer
      %s40 = sadd.s32 1, %s36
    $region7: #{tpu_custom_call.1} parent=1 // loop_footer_branch
      %35 = sbr.rel target = $region3
    $region8: #{tpu_custom_call.1} parent=1 // loop_exit
      _
    %1830 = vsyncpa [#allocation3], 1
    %s1831 = scalar_lea.sflag [#allocation3], 1
    %1832 = vsyncpa %s1831, 1
    %1833 = vsyncpa [#allocation6], 1
    %1834 = vsyncpa [#allocation9], 1
    %1835 = vsyncpa [#allocation12], 1
    %1836 = vsyncpa [#allocation15], 1
    %1837 = vsyncpa [#allocation4], 1
    %s1838 = scalar_lea.sflag [#allocation4], 1
    %1839 = vsyncpa %s1838, 1
    %1840 = vsyncpa [#allocation18], 1
    %s1841 = scalar_lea.sflag [#allocation18], 1
    %1842 = vsyncpa %s1841, 1

</llo_original>
